<compile_context>
chip_gen: v6e
topology: v6e:2x2x1
jax: 0.10.0
libtpu: 0.0.40
codegen_flags: <defaults>
</compile_context>

<pallas_src>
import functools
import math

import jax
import jax.numpy as jnp
from jax.experimental import pallas as pl
from jax.experimental.pallas import tpu as pltpu

# ---------------- model hyper-parameters (small, synthetic) -----------------
B = 2         # batch
T = 8         # target sequence length
S = 8         # source (memory) sequence length
D = 32        # d_model ("size" in the module)
H = 4         # attention heads
D_FF = 64     # feed-forward hidden dim
EPS = 1e-6
LANES = 128   # lane padding for the packed parameter slabs

# ---- packed parameter slab row offsets (must match _pack_params) -----------
V_LN0A, V_LN0B = 0, 1
V_LN1A, V_LN1B = 2, 3
V_LN2A, V_LN2B = 4, 5
V_SA_BQKV = 6
V_SA_BO = 7
V_CA_BQ = 8
V_CA_BKV = 9
V_CA_BO = 10
V_FF_B1 = 11
V_FF_B2 = 12
V_SA_WO = 16             # (D, D) f32 self-attn output projection
V_CA_WO = 16 + D         # (D, D) f32 cross-attn output projection
VEC_ROWS = 16 + 2 * D    # 80 rows x 128 lanes, f32

W_SA_WQKV = 0            # (D, 3D) bf16, Wq/bq pre-scaled by 1/sqrt(dk)
W_CA_WQ = D              # (D, D)
W_CA_WKV = 2 * D         # (D, 2D)
W_FF_W1 = 3 * D          # (D, D_FF)
W_FF_W2 = 4 * D          # (D_FF, D)
W_ROWS = 4 * D + D_FF    # 192 rows x 128 lanes, bf16


# ------------------------------ kernel helpers -------------------------------
def _layernorm(z, a2, b2):
    # Annotated-Transformer LayerNorm: unbiased std, eps added to std.
    mean = jnp.mean(z, axis=-1, keepdims=True)
    var = jnp.sum((z - mean) ** 2, axis=-1, keepdims=True) / (z.shape[-1] - 1)
    inv = pl.reciprocal(jnp.sqrt(var) + EPS, approx=True)   # EUP, not VALU divide
    return a2 * (z - mean) * inv + b2


def _mha(q_all, kv_all, q_off, k_off, v_off, mask_add, wo_f32, n_heads, dk):
    """Multi-head attention with the output projection folded into the head loop.

    q_all[:, q_off:...] holds the (already 1/sqrt(dk)-scaled) queries, kv_all holds keys /
    values at k_off / v_off.  For each head h the contribution
    softmax(q_h k_h^T + mask) v_h @ Wo[h*dk:(h+1)*dk, :] is accumulated directly, so no
    per-head context is ever written to a lane-sliced scratch.  Returns (rows, d_model).
    """
    out = None
    for h in range(n_heads):                       # static unrolled head loop
        lo = h * dk
        qh = q_all[:, q_off + lo: q_off + lo + dk].astype(jnp.bfloat16)   # (R, dk)
        kh = kv_all[:, k_off + lo: k_off + lo + dk].astype(jnp.bfloat16)  # (Rk, dk)
        vh = kv_all[:, v_off + lo: v_off + lo + dk].astype(jnp.bfloat16)  # (Rk, dk)
        # contract last dims directly: no explicit kh.T -> no XLU transpose
        s = jax.lax.dot_general(qh, kh, (((1,), (1,)), ((), ())),
                                preferred_element_type=jnp.float32) + mask_add
        s = s - jnp.max(s, axis=-1, keepdims=True)
        e = jnp.exp(s)
        p = e * pl.reciprocal(jnp.sum(e, axis=-1, keepdims=True), approx=True)
        ctx_h = jnp.dot(p.astype(jnp.bfloat16), vh,
                        preferred_element_type=jnp.float32)               # (R, dk)
        wo_h = wo_f32[lo:lo + dk, :].astype(jnp.bfloat16)   # 8-row f32 slice: vreg aligned
        contrib = jnp.dot(ctx_h.astype(jnp.bfloat16), wo_h,
                          preferred_element_type=jnp.float32)             # (R, d)
        out = contrib if out is None else out + contrib
    return out


# --------------------------- fused decoder block kernel -----------------------
def decoder_block_kernel(x_ref, mem_ref, tgt_ref, src_ref, vec_ref, w_ref,
                         out_ref, *, n_heads, d, d_ff):
    dk = d // n_heads
    x = x_ref[0].astype(jnp.float32)           # (R, D) residual stream, R = bb*T rows
    mem_bf = mem_ref[0].astype(jnp.bfloat16)   # (Rm, D) memory, bf16 for MXU
    tgt_add = tgt_ref[0]                       # (R, R)  additive block-diag mask
    src_add = src_ref[0]                       # (R, Rm) additive block-diag mask

    # ---- unpack parameter slabs (static, aligned row/col slices) -------------
    ln0a, ln0b = vec_ref[V_LN0A:V_LN0A + 1, :d], vec_ref[V_LN0B:V_LN0B + 1, :d]
    ln1a, ln1b = vec_ref[V_LN1A:V_LN1A + 1, :d], vec_ref[V_LN1B:V_LN1B + 1, :d]
    ln2a, ln2b = vec_ref[V_LN2A:V_LN2A + 1, :d], vec_ref[V_LN2B:V_LN2B + 1, :d]
    sa_bqkv = vec_ref[V_SA_BQKV:V_SA_BQKV + 1, :3 * d]
    sa_bo = vec_ref[V_SA_BO:V_SA_BO + 1, :d]
    ca_bq = vec_ref[V_CA_BQ:V_CA_BQ + 1, :d]
    ca_bkv = vec_ref[V_CA_BKV:V_CA_BKV + 1, :2 * d]
    ca_bo = vec_ref[V_CA_BO:V_CA_BO + 1, :d]
    ff_b1 = vec_ref[V_FF_B1:V_FF_B1 + 1, :d_ff]
    ff_b2 = vec_ref[V_FF_B2:V_FF_B2 + 1, :d]
    sa_wo = vec_ref[V_SA_WO:V_SA_WO + d, :d]           # f32 (D, D)
    ca_wo = vec_ref[V_CA_WO:V_CA_WO + d, :d]           # f32 (D, D)

    sa_wqkv = w_ref[W_SA_WQKV:W_SA_WQKV + d, :3 * d]   # bf16 (D, 3D)
    ca_wq = w_ref[W_CA_WQ:W_CA_WQ + d, :d]             # bf16 (D, D)
    ca_wkv = w_ref[W_CA_WKV:W_CA_WKV + d, :2 * d]      # bf16 (D, 2D)
    ff_w1 = w_ref[W_FF_W1:W_FF_W1 + d, :d_ff]          # bf16 (D, D_FF)
    ff_w2 = w_ref[W_FF_W2:W_FF_W2 + d_ff, :d]          # bf16 (D_FF, D)

    # ---- sublayer 0: masked self-attention -----------------------------------
    y = _layernorm(x, ln0a, ln0b)
    qkv = jnp.dot(y.astype(jnp.bfloat16), sa_wqkv,
                  preferred_element_type=jnp.float32) + sa_bqkv           # (R, 3D)
    x = x + _mha(qkv, qkv, 0, d, 2 * d, tgt_add, sa_wo, n_heads, dk) + sa_bo

    # ---- sublayer 1: cross-attention over memory ------------------------------
    y = _layernorm(x, ln1a, ln1b)
    q = jnp.dot(y.astype(jnp.bfloat16), ca_wq,
                preferred_element_type=jnp.float32) + ca_bq               # (R, D)
    kv = jnp.dot(mem_bf, ca_wkv,
                 preferred_element_type=jnp.float32) + ca_bkv             # (Rm, 2D)
    x = x + _mha(q, kv, 0, 0, d, src_add, ca_wo, n_heads, dk) + ca_bo

    # ---- sublayer 2: position-wise feed-forward --------------------------------
    y = _layernorm(x, ln2a, ln2b)
    hdn = jnp.dot(y.astype(jnp.bfloat16), ff_w1,
                  preferred_element_type=jnp.float32) + ff_b1
    hdn = jnp.maximum(hdn, 0.0)
    x = x + jnp.dot(hdn.astype(jnp.bfloat16), ff_w2,
                    preferred_element_type=jnp.float32) + ff_b2

    out_ref[0] = x.astype(out_ref.dtype)


# ------------------------------ wrapper helpers --------------------------------
def _pack_params(p):
    """Pack all parameters into two 128-lane slabs (f32 'vec' slab + bf16 weight slab)."""
    dk = D // H
    scale = 1.0 / math.sqrt(dk)
    assert 3 * D <= LANES and 2 * D <= LANES and D_FF <= LANES

    def frow(v):
        v = jnp.asarray(v, jnp.float32).reshape(1, -1)
        return jnp.pad(v, ((0, 0), (0, LANES - v.shape[1])))

    def fmat(w):
        w = jnp.asarray(w, jnp.float32)
        return jnp.pad(w, ((0, 0), (0, LANES - w.shape[1])))

    vec = jnp.concatenate(
        [frow(p["ln0_a"]), frow(p["ln0_b"]),
         frow(p["ln1_a"]), frow(p["ln1_b"]),
         frow(p["ln2_a"]), frow(p["ln2_b"]),
         frow(jnp.concatenate([p["sa_bq"] * scale, p["sa_bk"], p["sa_bv"]], axis=1)),
         frow(p["sa_bo"]),
         frow(p["ca_bq"] * scale),
         frow(jnp.concatenate([p["ca_bk"], p["ca_bv"]], axis=1)),
         frow(p["ff_b1"]) * 0 + frow(p["ca_bo"]),   # keep row order: ca_bo then ff_b1
         frow(p["ff_b1"]),
         frow(p["ff_b2"]),
         jnp.zeros((16 - 13, LANES), jnp.float32),
         fmat(p["sa_wo"]),
         fmat(p["ca_wo"])],
        axis=0)
    assert vec.shape == (VEC_ROWS, LANES)

    wslab = jnp.concatenate(
        [fmat(jnp.concatenate([p["sa_wq"] * scale, p["sa_wk"], p["sa_wv"]], axis=1)),
         fmat(p["ca_wq"] * scale),
         fmat(jnp.concatenate([p["ca_wk"], p["ca_wv"]], axis=1)),
         fmat(p["ff_w1"]),
         fmat(p["ff_w2"])],
        axis=0).astype(jnp.bfloat16)
    assert wslab.shape == (W_ROWS, LANES)
    return vec, wslab


def _block_diag_additive(mask, bb):
    """(B, T, S) 1/0 keep-mask -> (B//bb, bb*T, bb*S) additive mask (0 keep / -1e9 masked),
    block-diagonal so bb batch elements share one score matmul per head."""
    Bc, Tc, Sc = mask.shape
    nch = Bc // bb
    add = (mask.astype(jnp.float32) - 1.0) * 1e9
    add = add.reshape(nch, bb, Tc, Sc)
    eye = jnp.eye(bb, dtype=jnp.float32)
    big = jnp.where(eye[None, :, None, :, None] > 0.5,
                    add[:, :, :, None, :],
                    jnp.float32(-1e9))                    # (nch, bb, T, bb, S)
    return big.reshape(nch, bb * Tc, bb * Sc)


def _default_block_batch(batch):
    """Collapse the batch grid on single-TensorCore chips (v5e/v6e); keep 2 grid steps on
    v7x so the 'parallel' batch axis is sharded across its 2 TensorCores."""
    try:
        kind = jax.devices()[0].device_kind.lower()
    except Exception:
        kind = ""
    if "v7" in kind and batch >= 2 and batch % 2 == 0:
        return batch // 2
    return batch


# ------------------------------ pallas wrapper --------------------------------
def decoder_block(x, memory, src_mask, tgt_mask, p, block_batch=None):
    """Pallas DecoderBlock forward (single fused pallas_call)."""
    Bc, Tc, Dc = x.shape
    Sc = memory.shape[1]
    bb = block_batch if block_batch is not None else _default_block_batch(Bc)
    assert Bc % bb == 0
    nch = Bc // bb
    R, Rm = bb * Tc, bb * Sc

    vec, wslab = _pack_params(p)
    x3 = x.reshape(nch, R, Dc)
    mem3 = memory.reshape(nch, Rm, Dc)
    tgt3 = _block_diag_additive(tgt_mask, bb)    # (nch, R, R)
    src3 = _block_diag_additive(src_mask, bb)    # (nch, R, Rm)

    kern = functools.partial(decoder_block_kernel, n_heads=H, d=Dc, d_ff=D_FF)
    out = pl.pallas_call(
        kern,
        out_shape=jax.ShapeDtypeStruct((nch, R, Dc), jnp.float32),
        grid=(nch,),
        in_specs=[
            pl.BlockSpec((1, R, Dc), lambda b: (b, 0, 0)),    # x (row-stacked chunk)
            pl.BlockSpec((1, Rm, Dc), lambda b: (b, 0, 0)),   # memory
            pl.BlockSpec((1, R, R), lambda b: (b, 0, 0)),     # additive tgt mask
            pl.BlockSpec((1, R, Rm), lambda b: (b, 0, 0)),    # additive src mask
            pl.BlockSpec(vec.shape, lambda b: (0, 0)),        # f32 param slab
            pl.BlockSpec(wslab.shape, lambda b: (0, 0)),      # bf16 weight slab
        ],
        out_specs=pl.BlockSpec((1, R, Dc), lambda b: (b, 0, 0)),
        compiler_params=pltpu.CompilerParams(dimension_semantics=("parallel",)),
    )(x3, mem3, tgt3, src3, vec, wslab)
    return out.reshape(Bc, Tc, Dc)


# ------------------------- pure-JAX reference (check) -------------------------
def _ref_mha(q_in, kv_in, mask, wq, bq, wk, bk, wv, bv, wo, bo):
    Bc, Tc, Dc = q_in.shape
    Sc = kv_in.shape[1]
    dk = Dc // H
    q = (q_in @ wq + bq).reshape(Bc, Tc, H, dk).transpose(0, 2, 1, 3)
    k = (kv_in @ wk + bk).reshape(Bc, Sc, H, dk).transpose(0, 2, 1, 3)
    v = (kv_in @ wv + bv).reshape(Bc, Sc, H, dk).transpose(0, 2, 1, 3)
    s = jnp.einsum("bhtd,bhsd->bhts", q, k) / math.sqrt(dk)
    s = jnp.where(mask[:, None, :, :] > 0, s, -1e9)
    a = jax.nn.softmax(s, axis=-1)
    ctx = jnp.einsum("bhts,bhsd->bhtd", a, v).transpose(0, 2, 1, 3).reshape(Bc, Tc, Dc)
    return ctx @ wo + bo


def _ref_ln(z, a, b):
    mean = jnp.mean(z, axis=-1, keepdims=True)
    std = jnp.sqrt(jnp.sum((z - mean) ** 2, axis=-1, keepdims=True) / (z.shape[-1] - 1))
    return a * (z - mean) / (std + EPS) + b


def decoder_block_ref(x, memory, src_mask, tgt_mask, p):
    y = _ref_ln(x, p["ln0_a"], p["ln0_b"])
    x = x + _ref_mha(y, y, tgt_mask, p["sa_wq"], p["sa_bq"], p["sa_wk"], p["sa_bk"],
                     p["sa_wv"], p["sa_bv"], p["sa_wo"], p["sa_bo"])
    y = _ref_ln(x, p["ln1_a"], p["ln1_b"])
    x = x + _ref_mha(y, memory, src_mask, p["ca_wq"], p["ca_bq"], p["ca_wk"], p["ca_bk"],
                     p["ca_wv"], p["ca_bv"], p["ca_wo"], p["ca_bo"])
    y = _ref_ln(x, p["ln2_a"], p["ln2_b"])
    h = jnp.maximum(y @ p["ff_w1"] + p["ff_b1"], 0.0)
    return x + (h @ p["ff_w2"] + p["ff_b2"])


# ----------------------------------- main -------------------------------------
def _init_params(key):
    ks = jax.random.split(key, 20)
    std = 0.1
    p = {
        "ln0_a": jnp.ones((1, D), jnp.float32), "ln0_b": jnp.zeros((1, D), jnp.float32),
        "ln1_a": jnp.ones((1, D), jnp.float32), "ln1_b": jnp.zeros((1, D), jnp.float32),
        "ln2_a": jnp.ones((1, D), jnp.float32), "ln2_b": jnp.zeros((1, D), jnp.float32),
    }
    names = ["sa_wq", "sa_wk", "sa_wv", "sa_wo", "ca_wq", "ca_wk", "ca_wv", "ca_wo"]
    for i, n in enumerate(names):
        p[n] = std * jax.random.normal(ks[i], (D, D), jnp.float32)
        p[n.replace("w", "b")] = jnp.zeros((1, D), jnp.float32)
    p["ff_w1"] = std * jax.random.normal(ks[10], (D, D_FF), jnp.float32)
    p["ff_b1"] = jnp.zeros((1, D_FF), jnp.float32)
    p["ff_w2"] = std * jax.random.normal(ks[11], (D_FF, D), jnp.float32)
    p["ff_b2"] = jnp.zeros((1, D), jnp.float32)
    return p


if __name__ == "__main__":
    key = jax.random.PRNGKey(0)
    kx, km, kp = jax.random.split(key, 3)

    x = jax.random.normal(kx, (B, T, D), jnp.float32)
    memory = jax.random.normal(km, (B, S, D), jnp.float32)
    params = _init_params(kp)

    # masks as float (1 keep / 0 masked): causal target mask, all-ones source mask
    tgt_mask = jnp.broadcast_to(
        jnp.tril(jnp.ones((T, T), jnp.float32))[None, :, :], (B, T, T))
    src_mask = jnp.ones((B, T, S), jnp.float32)

    out = decoder_block(x, memory, src_mask, tgt_mask, params)
    out = jax.block_until_ready(out)

    ref = decoder_block_ref(x, memory, src_mask, tgt_mask, params)
    assert out.shape == (B, T, D)
    assert jnp.allclose(out, ref, rtol=2e-2, atol=2e-2), "mismatch vs reference"

    print("KERNEL_OK")
</pallas_src>

<mosaic_0001>
module attributes {stable_mosaic.version = 11 : i64} {
  func.func @decoder_block_kernel(%arg0: i32, %arg1: memref<1x16x32xf32, #tpu.memory_space<vmem>>, %arg2: memref<1x16x32xf32, #tpu.memory_space<vmem>>, %arg3: memref<1x16x16xf32, #tpu.memory_space<vmem>>, %arg4: memref<1x16x16xf32, #tpu.memory_space<vmem>>, %arg5: memref<80x128xf32, #tpu.memory_space<vmem>>, %arg6: memref<192x128xbf16, #tpu.memory_space<vmem>>, %arg7: memref<1x16x32xf32, #tpu.memory_space<vmem>>) attributes {dimension_semantics = [#tpu.dimension_semantics<parallel>], iteration_bounds = array<i64: 1>, scalar_prefetch = 0 : i64, scratch_operands = 0 : i64, tpu.core_type = #tpu.core_type<tc>, window_params = [{transform_indices = @transform_0, window_bounds = array<i64: 1, 16, 32>}, {transform_indices = @transform_1, window_bounds = array<i64: 1, 16, 32>}, {transform_indices = @transform_2, window_bounds = array<i64: 1, 16, 16>}, {transform_indices = @transform_3, window_bounds = array<i64: 1, 16, 16>}, {pipeline_mode = #tpu.pipeline_mode<synchronous>, transform_indices = @transform_4, window_bounds = array<i64: 80, 128>}, {pipeline_mode = #tpu.pipeline_mode<synchronous>, transform_indices = @transform_5, window_bounds = array<i64: 192, 128>}, {transform_indices = @transform_6, window_bounds = array<i64: 1, 16, 32>}]} {
    %c0 = arith.constant 0 : index
    %c0_0 = arith.constant 0 : index
    %c0_1 = arith.constant 0 : index
    %0 = vector.load %arg1[%c0, %c0_0, %c0_1] : memref<1x16x32xf32, #tpu.memory_space<vmem>>, vector<1x16x32xf32>
    %1 = vector.shape_cast %0 : vector<1x16x32xf32> to vector<16x32xf32>
    %c0_2 = arith.constant 0 : index
    %c0_3 = arith.constant 0 : index
    %c0_4 = arith.constant 0 : index
    %2 = vector.load %arg2[%c0_2, %c0_3, %c0_4] : memref<1x16x32xf32, #tpu.memory_space<vmem>>, vector<1x16x32xf32>
    %3 = vector.shape_cast %2 : vector<1x16x32xf32> to vector<16x32xf32>
    %4 = arith.truncf %3 : vector<16x32xf32> to vector<16x32xbf16>
    %c0_5 = arith.constant 0 : index
    %c0_6 = arith.constant 0 : index
    %c0_7 = arith.constant 0 : index
    %5 = vector.load %arg3[%c0_5, %c0_6, %c0_7] : memref<1x16x16xf32, #tpu.memory_space<vmem>>, vector<1x16x16xf32>
    %6 = vector.shape_cast %5 : vector<1x16x16xf32> to vector<16x16xf32>
    %c0_8 = arith.constant 0 : index
    %c0_9 = arith.constant 0 : index
    %c0_10 = arith.constant 0 : index
    %7 = vector.load %arg4[%c0_8, %c0_9, %c0_10] : memref<1x16x16xf32, #tpu.memory_space<vmem>>, vector<1x16x16xf32>
    %8 = vector.shape_cast %7 : vector<1x16x16xf32> to vector<16x16xf32>
    %c0_11 = arith.constant 0 : index
    %c0_12 = arith.constant 0 : index
    %9 = vector.load %arg5[%c0_11, %c0_12] : memref<80x128xf32, #tpu.memory_space<vmem>>, vector<1x32xf32>
    %c1 = arith.constant 1 : index
    %c0_13 = arith.constant 0 : index
    %10 = vector.load %arg5[%c1, %c0_13] : memref<80x128xf32, #tpu.memory_space<vmem>>, vector<1x32xf32>
    %c2 = arith.constant 2 : index
    %c0_14 = arith.constant 0 : index
    %11 = vector.load %arg5[%c2, %c0_14] : memref<80x128xf32, #tpu.memory_space<vmem>>, vector<1x32xf32>
    %c3 = arith.constant 3 : index
    %c0_15 = arith.constant 0 : index
    %12 = vector.load %arg5[%c3, %c0_15] : memref<80x128xf32, #tpu.memory_space<vmem>>, vector<1x32xf32>
    %c4 = arith.constant 4 : index
    %c0_16 = arith.constant 0 : index
    %13 = vector.load %arg5[%c4, %c0_16] : memref<80x128xf32, #tpu.memory_space<vmem>>, vector<1x32xf32>
    %c5 = arith.constant 5 : index
    %c0_17 = arith.constant 0 : index
    %14 = vector.load %arg5[%c5, %c0_17] : memref<80x128xf32, #tpu.memory_space<vmem>>, vector<1x32xf32>
    %c6 = arith.constant 6 : index
    %c0_18 = arith.constant 0 : index
    %15 = vector.load %arg5[%c6, %c0_18] : memref<80x128xf32, #tpu.memory_space<vmem>>, vector<1x96xf32>
    %c7 = arith.constant 7 : index
    %c0_19 = arith.constant 0 : index
    %16 = vector.load %arg5[%c7, %c0_19] : memref<80x128xf32, #tpu.memory_space<vmem>>, vector<1x32xf32>
    %c8 = arith.constant 8 : index
    %c0_20 = arith.constant 0 : index
    %17 = vector.load %arg5[%c8, %c0_20] : memref<80x128xf32, #tpu.memory_space<vmem>>, vector<1x32xf32>
    %c9 = arith.constant 9 : index
    %c0_21 = arith.constant 0 : index
    %18 = vector.load %arg5[%c9, %c0_21] : memref<80x128xf32, #tpu.memory_space<vmem>>, vector<1x64xf32>
    %c10 = arith.constant 10 : index
    %c0_22 = arith.constant 0 : index
    %19 = vector.load %arg5[%c10, %c0_22] : memref<80x128xf32, #tpu.memory_space<vmem>>, vector<1x32xf32>
    %c11 = arith.constant 11 : index
    %c0_23 = arith.constant 0 : index
    %20 = vector.load %arg5[%c11, %c0_23] : memref<80x128xf32, #tpu.memory_space<vmem>>, vector<1x64xf32>
    %c12 = arith.constant 12 : index
    %c0_24 = arith.constant 0 : index
    %21 = vector.load %arg5[%c12, %c0_24] : memref<80x128xf32, #tpu.memory_space<vmem>>, vector<1x32xf32>
    %c16 = arith.constant 16 : index
    %c0_25 = arith.constant 0 : index
    %22 = vector.load %arg5[%c16, %c0_25] : memref<80x128xf32, #tpu.memory_space<vmem>>, vector<32x32xf32>
    %c48 = arith.constant 48 : index
    %c0_26 = arith.constant 0 : index
    %23 = vector.load %arg5[%c48, %c0_26] : memref<80x128xf32, #tpu.memory_space<vmem>>, vector<32x32xf32>
    %c0_27 = arith.constant 0 : index
    %c0_28 = arith.constant 0 : index
    %24 = vector.load %arg6[%c0_27, %c0_28] : memref<192x128xbf16, #tpu.memory_space<vmem>>, vector<32x96xbf16>
    %c32 = arith.constant 32 : index
    %c0_29 = arith.constant 0 : index
    %25 = vector.load %arg6[%c32, %c0_29] : memref<192x128xbf16, #tpu.memory_space<vmem>>, vector<32x32xbf16>
    %c64 = arith.constant 64 : index
    %c0_30 = arith.constant 0 : index
    %26 = vector.load %arg6[%c64, %c0_30] : memref<192x128xbf16, #tpu.memory_space<vmem>>, vector<32x64xbf16>
    %c96 = arith.constant 96 : index
    %c0_31 = arith.constant 0 : index
    %27 = vector.load %arg6[%c96, %c0_31] : memref<192x128xbf16, #tpu.memory_space<vmem>>, vector<32x64xbf16>
    %c128 = arith.constant 128 : index
    %c0_32 = arith.constant 0 : index
    %28 = vector.load %arg6[%c128, %c0_32] : memref<192x128xbf16, #tpu.memory_space<vmem>>, vector<64x32xbf16>
    %cst = arith.constant dense<0.000000e+00> : vector<16xf32>
    %29 = vector.multi_reduction <add>, %1, %cst [1] : vector<16x32xf32> to vector<16xf32>
    %30 = vector.shape_cast %29 : vector<16xf32> to vector<16x1xf32>
    %cst_33 = arith.constant 3.200000e+01 : f32
    %31 = vector.broadcast %cst_33 : f32 to vector<16x1xf32>
    %32 = arith.divf %30, %31 : vector<16x1xf32>
    %33 = vector.broadcast %32 : vector<16x1xf32> to vector<16x32xf32>
    %34 = arith.subf %1, %33 : vector<16x32xf32>
    %35 = arith.mulf %34, %34 : vector<16x32xf32>
    %cst_34 = arith.constant dense<0.000000e+00> : vector<16xf32>
    %36 = vector.multi_reduction <add>, %35, %cst_34 [1] : vector<16x32xf32> to vector<16xf32>
    %37 = vector.shape_cast %36 : vector<16xf32> to vector<16x1xf32>
    %cst_35 = arith.constant 3.100000e+01 : f32
    %38 = vector.broadcast %cst_35 : f32 to vector<16x1xf32>
    %39 = arith.divf %37, %38 : vector<16x1xf32>
    %40 = math.sqrt %39 : vector<16x1xf32>
    %cst_36 = arith.constant 9.99999997E-7 : f32
    %41 = vector.broadcast %cst_36 : f32 to vector<16x1xf32>
    %42 = arith.addf %40, %41 : vector<16x1xf32>
    %43 = tpu.reciprocal %42 {approx = true} : vector<16x1xf32> -> vector<16x1xf32>
    %44 = vector.broadcast %32 : vector<16x1xf32> to vector<16x32xf32>
    %45 = arith.subf %1, %44 : vector<16x32xf32>
    %46 = vector.broadcast %9 : vector<1x32xf32> to vector<16x32xf32>
    %47 = arith.mulf %46, %45 : vector<16x32xf32>
    %48 = vector.broadcast %43 : vector<16x1xf32> to vector<16x32xf32>
    %49 = arith.mulf %47, %48 : vector<16x32xf32>
    %50 = vector.broadcast %10 : vector<1x32xf32> to vector<16x32xf32>
    %51 = arith.addf %49, %50 : vector<16x32xf32>
    %52 = arith.truncf %51 : vector<16x32xf32> to vector<16x32xbf16>
    %cst_37 = arith.constant dense<0.000000e+00> : vector<16x96xf32>
    %53 = tpu.matmul %52, %24, %cst_37 {dimension_numbers = #tpu.dot_dimension_numbers<[1], [0], [0], [1], [0, 0, 1, 1], [], []>} : vector<16x32xbf16>, vector<32x96xbf16>, vector<16x96xf32> -> vector<16x96xf32>
    %54 = vector.broadcast %15 : vector<1x96xf32> to vector<16x96xf32>
    %55 = arith.addf %53, %54 : vector<16x96xf32>
    %56 = vector.extract_strided_slice %55 {offsets = [0, 0], sizes = [16, 8], strides = [1, 1]} : vector<16x96xf32> to vector<16x8xf32>
    %57 = arith.truncf %56 : vector<16x8xf32> to vector<16x8xbf16>
    %58 = vector.extract_strided_slice %55 {offsets = [0, 32], sizes = [16, 8], strides = [1, 1]} : vector<16x96xf32> to vector<16x8xf32>
    %59 = arith.truncf %58 : vector<16x8xf32> to vector<16x8xbf16>
    %60 = vector.extract_strided_slice %55 {offsets = [0, 64], sizes = [16, 8], strides = [1, 1]} : vector<16x96xf32> to vector<16x8xf32>
    %61 = arith.truncf %60 : vector<16x8xf32> to vector<16x8xbf16>
    %cst_38 = arith.constant dense<0.000000e+00> : vector<16x16xf32>
    %62 = tpu.matmul %57, %59, %cst_38 {dimension_numbers = #tpu.dot_dimension_numbers<[1], [1], [0], [0], [0, 0, 1, 0], [], []>} : vector<16x8xbf16>, vector<16x8xbf16>, vector<16x16xf32> -> vector<16x16xf32>
    %63 = arith.addf %62, %6 : vector<16x16xf32>
    %cst_39 = arith.constant dense<0xFF800000> : vector<16xf32>
    %64 = vector.multi_reduction <maximumf>, %63, %cst_39 [1] : vector<16x16xf32> to vector<16xf32>
    %65 = vector.shape_cast %64 : vector<16xf32> to vector<16x1xf32>
    %66 = vector.broadcast %65 : vector<16x1xf32> to vector<16x16xf32>
    %67 = arith.subf %63, %66 : vector<16x16xf32>
    %68 = math.exp %67 : vector<16x16xf32>
    %cst_40 = arith.constant dense<0.000000e+00> : vector<16xf32>
    %69 = vector.multi_reduction <add>, %68, %cst_40 [1] : vector<16x16xf32> to vector<16xf32>
    %70 = vector.shape_cast %69 : vector<16xf32> to vector<16x1xf32>
    %71 = tpu.reciprocal %70 {approx = true} : vector<16x1xf32> -> vector<16x1xf32>
    %72 = vector.broadcast %71 : vector<16x1xf32> to vector<16x16xf32>
    %73 = arith.mulf %68, %72 : vector<16x16xf32>
    %74 = arith.truncf %73 : vector<16x16xf32> to vector<16x16xbf16>
    %cst_41 = arith.constant dense<0.000000e+00> : vector<16x8xf32>
    %75 = tpu.matmul %74, %61, %cst_41 {dimension_numbers = #tpu.dot_dimension_numbers<[1], [0], [0], [1], [0, 0, 1, 1], [], []>} : vector<16x16xbf16>, vector<16x8xbf16>, vector<16x8xf32> -> vector<16x8xf32>
    %76 = vector.extract_strided_slice %22 {offsets = [0, 0], sizes = [8, 32], strides = [1, 1]} : vector<32x32xf32> to vector<8x32xf32>
    %77 = arith.truncf %76 : vector<8x32xf32> to vector<8x32xbf16>
    %78 = arith.truncf %75 : vector<16x8xf32> to vector<16x8xbf16>
    %cst_42 = arith.constant dense<0.000000e+00> : vector<16x32xf32>
    %79 = tpu.matmul %78, %77, %cst_42 {dimension_numbers = #tpu.dot_dimension_numbers<[1], [0], [0], [1], [0, 0, 1, 1], [], []>} : vector<16x8xbf16>, vector<8x32xbf16>, vector<16x32xf32> -> vector<16x32xf32>
    %80 = vector.extract_strided_slice %55 {offsets = [0, 8], sizes = [16, 8], strides = [1, 1]} : vector<16x96xf32> to vector<16x8xf32>
    %81 = arith.truncf %80 : vector<16x8xf32> to vector<16x8xbf16>
    %82 = vector.extract_strided_slice %55 {offsets = [0, 40], sizes = [16, 8], strides = [1, 1]} : vector<16x96xf32> to vector<16x8xf32>
    %83 = arith.truncf %82 : vector<16x8xf32> to vector<16x8xbf16>
    %84 = vector.extract_strided_slice %55 {offsets = [0, 72], sizes = [16, 8], strides = [1, 1]} : vector<16x96xf32> to vector<16x8xf32>
    %85 = arith.truncf %84 : vector<16x8xf32> to vector<16x8xbf16>
    %cst_43 = arith.constant dense<0.000000e+00> : vector<16x16xf32>
    %86 = tpu.matmul %81, %83, %cst_43 {dimension_numbers = #tpu.dot_dimension_numbers<[1], [1], [0], [0], [0, 0, 1, 0], [], []>} : vector<16x8xbf16>, vector<16x8xbf16>, vector<16x16xf32> -> vector<16x16xf32>
    %87 = arith.addf %86, %6 : vector<16x16xf32>
    %cst_44 = arith.constant dense<0xFF800000> : vector<16xf32>
    %88 = vector.multi_reduction <maximumf>, %87, %cst_44 [1] : vector<16x16xf32> to vector<16xf32>
    %89 = vector.shape_cast %88 : vector<16xf32> to vector<16x1xf32>
    %90 = vector.broadcast %89 : vector<16x1xf32> to vector<16x16xf32>
    %91 = arith.subf %87, %90 : vector<16x16xf32>
    %92 = math.exp %91 : vector<16x16xf32>
    %cst_45 = arith.constant dense<0.000000e+00> : vector<16xf32>
    %93 = vector.multi_reduction <add>, %92, %cst_45 [1] : vector<16x16xf32> to vector<16xf32>
    %94 = vector.shape_cast %93 : vector<16xf32> to vector<16x1xf32>
    %95 = tpu.reciprocal %94 {approx = true} : vector<16x1xf32> -> vector<16x1xf32>
    %96 = vector.broadcast %95 : vector<16x1xf32> to vector<16x16xf32>
    %97 = arith.mulf %92, %96 : vector<16x16xf32>
    %98 = arith.truncf %97 : vector<16x16xf32> to vector<16x16xbf16>
    %cst_46 = arith.constant dense<0.000000e+00> : vector<16x8xf32>
    %99 = tpu.matmul %98, %85, %cst_46 {dimension_numbers = #tpu.dot_dimension_numbers<[1], [0], [0], [1], [0, 0, 1, 1], [], []>} : vector<16x16xbf16>, vector<16x8xbf16>, vector<16x8xf32> -> vector<16x8xf32>
    %100 = vector.extract_strided_slice %22 {offsets = [8, 0], sizes = [8, 32], strides = [1, 1]} : vector<32x32xf32> to vector<8x32xf32>
    %101 = arith.truncf %100 : vector<8x32xf32> to vector<8x32xbf16>
    %102 = arith.truncf %99 : vector<16x8xf32> to vector<16x8xbf16>
    %cst_47 = arith.constant dense<0.000000e+00> : vector<16x32xf32>
    %103 = tpu.matmul %102, %101, %cst_47 {dimension_numbers = #tpu.dot_dimension_numbers<[1], [0], [0], [1], [0, 0, 1, 1], [], []>} : vector<16x8xbf16>, vector<8x32xbf16>, vector<16x32xf32> -> vector<16x32xf32>
    %104 = arith.addf %79, %103 : vector<16x32xf32>
    %105 = vector.extract_strided_slice %55 {offsets = [0, 16], sizes = [16, 8], strides = [1, 1]} : vector<16x96xf32> to vector<16x8xf32>
    %106 = arith.truncf %105 : vector<16x8xf32> to vector<16x8xbf16>
    %107 = vector.extract_strided_slice %55 {offsets = [0, 48], sizes = [16, 8], strides = [1, 1]} : vector<16x96xf32> to vector<16x8xf32>
    %108 = arith.truncf %107 : vector<16x8xf32> to vector<16x8xbf16>
    %109 = vector.extract_strided_slice %55 {offsets = [0, 80], sizes = [16, 8], strides = [1, 1]} : vector<16x96xf32> to vector<16x8xf32>
    %110 = arith.truncf %109 : vector<16x8xf32> to vector<16x8xbf16>
    %cst_48 = arith.constant dense<0.000000e+00> : vector<16x16xf32>
    %111 = tpu.matmul %106, %108, %cst_48 {dimension_numbers = #tpu.dot_dimension_numbers<[1], [1], [0], [0], [0, 0, 1, 0], [], []>} : vector<16x8xbf16>, vector<16x8xbf16>, vector<16x16xf32> -> vector<16x16xf32>
    %112 = arith.addf %111, %6 : vector<16x16xf32>
    %cst_49 = arith.constant dense<0xFF800000> : vector<16xf32>
    %113 = vector.multi_reduction <maximumf>, %112, %cst_49 [1] : vector<16x16xf32> to vector<16xf32>
    %114 = vector.shape_cast %113 : vector<16xf32> to vector<16x1xf32>
    %115 = vector.broadcast %114 : vector<16x1xf32> to vector<16x16xf32>
    %116 = arith.subf %112, %115 : vector<16x16xf32>
    %117 = math.exp %116 : vector<16x16xf32>
    %cst_50 = arith.constant dense<0.000000e+00> : vector<16xf32>
    %118 = vector.multi_reduction <add>, %117, %cst_50 [1] : vector<16x16xf32> to vector<16xf32>
    %119 = vector.shape_cast %118 : vector<16xf32> to vector<16x1xf32>
    %120 = tpu.reciprocal %119 {approx = true} : vector<16x1xf32> -> vector<16x1xf32>
    %121 = vector.broadcast %120 : vector<16x1xf32> to vector<16x16xf32>
    %122 = arith.mulf %117, %121 : vector<16x16xf32>
    %123 = arith.truncf %122 : vector<16x16xf32> to vector<16x16xbf16>
    %cst_51 = arith.constant dense<0.000000e+00> : vector<16x8xf32>
    %124 = tpu.matmul %123, %110, %cst_51 {dimension_numbers = #tpu.dot_dimension_numbers<[1], [0], [0], [1], [0, 0, 1, 1], [], []>} : vector<16x16xbf16>, vector<16x8xbf16>, vector<16x8xf32> -> vector<16x8xf32>
    %125 = vector.extract_strided_slice %22 {offsets = [16, 0], sizes = [8, 32], strides = [1, 1]} : vector<32x32xf32> to vector<8x32xf32>
    %126 = arith.truncf %125 : vector<8x32xf32> to vector<8x32xbf16>
    %127 = arith.truncf %124 : vector<16x8xf32> to vector<16x8xbf16>
    %cst_52 = arith.constant dense<0.000000e+00> : vector<16x32xf32>
    %128 = tpu.matmul %127, %126, %cst_52 {dimension_numbers = #tpu.dot_dimension_numbers<[1], [0], [0], [1], [0, 0, 1, 1], [], []>} : vector<16x8xbf16>, vector<8x32xbf16>, vector<16x32xf32> -> vector<16x32xf32>
    %129 = arith.addf %104, %128 : vector<16x32xf32>
    %130 = vector.extract_strided_slice %55 {offsets = [0, 24], sizes = [16, 8], strides = [1, 1]} : vector<16x96xf32> to vector<16x8xf32>
    %131 = arith.truncf %130 : vector<16x8xf32> to vector<16x8xbf16>
    %132 = vector.extract_strided_slice %55 {offsets = [0, 56], sizes = [16, 8], strides = [1, 1]} : vector<16x96xf32> to vector<16x8xf32>
    %133 = arith.truncf %132 : vector<16x8xf32> to vector<16x8xbf16>
    %134 = vector.extract_strided_slice %55 {offsets = [0, 88], sizes = [16, 8], strides = [1, 1]} : vector<16x96xf32> to vector<16x8xf32>
    %135 = arith.truncf %134 : vector<16x8xf32> to vector<16x8xbf16>
    %cst_53 = arith.constant dense<0.000000e+00> : vector<16x16xf32>
    %136 = tpu.matmul %131, %133, %cst_53 {dimension_numbers = #tpu.dot_dimension_numbers<[1], [1], [0], [0], [0, 0, 1, 0], [], []>} : vector<16x8xbf16>, vector<16x8xbf16>, vector<16x16xf32> -> vector<16x16xf32>
    %137 = arith.addf %136, %6 : vector<16x16xf32>
    %cst_54 = arith.constant dense<0xFF800000> : vector<16xf32>
    %138 = vector.multi_reduction <maximumf>, %137, %cst_54 [1] : vector<16x16xf32> to vector<16xf32>
    %139 = vector.shape_cast %138 : vector<16xf32> to vector<16x1xf32>
    %140 = vector.broadcast %139 : vector<16x1xf32> to vector<16x16xf32>
    %141 = arith.subf %137, %140 : vector<16x16xf32>
    %142 = math.exp %141 : vector<16x16xf32>
    %cst_55 = arith.constant dense<0.000000e+00> : vector<16xf32>
    %143 = vector.multi_reduction <add>, %142, %cst_55 [1] : vector<16x16xf32> to vector<16xf32>
    %144 = vector.shape_cast %143 : vector<16xf32> to vector<16x1xf32>
    %145 = tpu.reciprocal %144 {approx = true} : vector<16x1xf32> -> vector<16x1xf32>
    %146 = vector.broadcast %145 : vector<16x1xf32> to vector<16x16xf32>
    %147 = arith.mulf %142, %146 : vector<16x16xf32>
    %148 = arith.truncf %147 : vector<16x16xf32> to vector<16x16xbf16>
    %cst_56 = arith.constant dense<0.000000e+00> : vector<16x8xf32>
    %149 = tpu.matmul %148, %135, %cst_56 {dimension_numbers = #tpu.dot_dimension_numbers<[1], [0], [0], [1], [0, 0, 1, 1], [], []>} : vector<16x16xbf16>, vector<16x8xbf16>, vector<16x8xf32> -> vector<16x8xf32>
    %150 = vector.extract_strided_slice %22 {offsets = [24, 0], sizes = [8, 32], strides = [1, 1]} : vector<32x32xf32> to vector<8x32xf32>
    %151 = arith.truncf %150 : vector<8x32xf32> to vector<8x32xbf16>
    %152 = arith.truncf %149 : vector<16x8xf32> to vector<16x8xbf16>
    %cst_57 = arith.constant dense<0.000000e+00> : vector<16x32xf32>
    %153 = tpu.matmul %152, %151, %cst_57 {dimension_numbers = #tpu.dot_dimension_numbers<[1], [0], [0], [1], [0, 0, 1, 1], [], []>} : vector<16x8xbf16>, vector<8x32xbf16>, vector<16x32xf32> -> vector<16x32xf32>
    %154 = arith.addf %129, %153 : vector<16x32xf32>
    %155 = arith.addf %1, %154 : vector<16x32xf32>
    %156 = vector.broadcast %16 : vector<1x32xf32> to vector<16x32xf32>
    %157 = arith.addf %155, %156 : vector<16x32xf32>
    %cst_58 = arith.constant dense<0.000000e+00> : vector<16xf32>
    %158 = vector.multi_reduction <add>, %157, %cst_58 [1] : vector<16x32xf32> to vector<16xf32>
    %159 = vector.shape_cast %158 : vector<16xf32> to vector<16x1xf32>
    %cst_59 = arith.constant 3.200000e+01 : f32
    %160 = vector.broadcast %cst_59 : f32 to vector<16x1xf32>
    %161 = arith.divf %159, %160 : vector<16x1xf32>
    %162 = vector.broadcast %161 : vector<16x1xf32> to vector<16x32xf32>
    %163 = arith.subf %157, %162 : vector<16x32xf32>
    %164 = arith.mulf %163, %163 : vector<16x32xf32>
    %cst_60 = arith.constant dense<0.000000e+00> : vector<16xf32>
    %165 = vector.multi_reduction <add>, %164, %cst_60 [1] : vector<16x32xf32> to vector<16xf32>
    %166 = vector.shape_cast %165 : vector<16xf32> to vector<16x1xf32>
    %cst_61 = arith.constant 3.100000e+01 : f32
    %167 = vector.broadcast %cst_61 : f32 to vector<16x1xf32>
    %168 = arith.divf %166, %167 : vector<16x1xf32>
    %169 = math.sqrt %168 : vector<16x1xf32>
    %cst_62 = arith.constant 9.99999997E-7 : f32
    %170 = vector.broadcast %cst_62 : f32 to vector<16x1xf32>
    %171 = arith.addf %169, %170 : vector<16x1xf32>
    %172 = tpu.reciprocal %171 {approx = true} : vector<16x1xf32> -> vector<16x1xf32>
    %173 = vector.broadcast %161 : vector<16x1xf32> to vector<16x32xf32>
    %174 = arith.subf %157, %173 : vector<16x32xf32>
    %175 = vector.broadcast %11 : vector<1x32xf32> to vector<16x32xf32>
    %176 = arith.mulf %175, %174 : vector<16x32xf32>
    %177 = vector.broadcast %172 : vector<16x1xf32> to vector<16x32xf32>
    %178 = arith.mulf %176, %177 : vector<16x32xf32>
    %179 = vector.broadcast %12 : vector<1x32xf32> to vector<16x32xf32>
    %180 = arith.addf %178, %179 : vector<16x32xf32>
    %181 = arith.truncf %180 : vector<16x32xf32> to vector<16x32xbf16>
    %cst_63 = arith.constant dense<0.000000e+00> : vector<16x32xf32>
    %182 = tpu.matmul %181, %25, %cst_63 {dimension_numbers = #tpu.dot_dimension_numbers<[1], [0], [0], [1], [0, 0, 1, 1], [], []>} : vector<16x32xbf16>, vector<32x32xbf16>, vector<16x32xf32> -> vector<16x32xf32>
    %183 = vector.broadcast %17 : vector<1x32xf32> to vector<16x32xf32>
    %184 = arith.addf %182, %183 : vector<16x32xf32>
    %cst_64 = arith.constant dense<0.000000e+00> : vector<16x64xf32>
    %185 = tpu.matmul %4, %26, %cst_64 {dimension_numbers = #tpu.dot_dimension_numbers<[1], [0], [0], [1], [0, 0, 1, 1], [], []>} : vector<16x32xbf16>, vector<32x64xbf16>, vector<16x64xf32> -> vector<16x64xf32>
    %186 = vector.broadcast %18 : vector<1x64xf32> to vector<16x64xf32>
    %187 = arith.addf %185, %186 : vector<16x64xf32>
    %188 = vector.extract_strided_slice %184 {offsets = [0, 0], sizes = [16, 8], strides = [1, 1]} : vector<16x32xf32> to vector<16x8xf32>
    %189 = arith.truncf %188 : vector<16x8xf32> to vector<16x8xbf16>
    %190 = vector.extract_strided_slice %187 {offsets = [0, 0], sizes = [16, 8], strides = [1, 1]} : vector<16x64xf32> to vector<16x8xf32>
    %191 = arith.truncf %190 : vector<16x8xf32> to vector<16x8xbf16>
    %192 = vector.extract_strided_slice %187 {offsets = [0, 32], sizes = [16, 8], strides = [1, 1]} : vector<16x64xf32> to vector<16x8xf32>
    %193 = arith.truncf %192 : vector<16x8xf32> to vector<16x8xbf16>
    %cst_65 = arith.constant dense<0.000000e+00> : vector<16x16xf32>
    %194 = tpu.matmul %189, %191, %cst_65 {dimension_numbers = #tpu.dot_dimension_numbers<[1], [1], [0], [0], [0, 0, 1, 0], [], []>} : vector<16x8xbf16>, vector<16x8xbf16>, vector<16x16xf32> -> vector<16x16xf32>
    %195 = arith.addf %194, %8 : vector<16x16xf32>
    %cst_66 = arith.constant dense<0xFF800000> : vector<16xf32>
    %196 = vector.multi_reduction <maximumf>, %195, %cst_66 [1] : vector<16x16xf32> to vector<16xf32>
    %197 = vector.shape_cast %196 : vector<16xf32> to vector<16x1xf32>
    %198 = vector.broadcast %197 : vector<16x1xf32> to vector<16x16xf32>
    %199 = arith.subf %195, %198 : vector<16x16xf32>
    %200 = math.exp %199 : vector<16x16xf32>
    %cst_67 = arith.constant dense<0.000000e+00> : vector<16xf32>
    %201 = vector.multi_reduction <add>, %200, %cst_67 [1] : vector<16x16xf32> to vector<16xf32>
    %202 = vector.shape_cast %201 : vector<16xf32> to vector<16x1xf32>
    %203 = tpu.reciprocal %202 {approx = true} : vector<16x1xf32> -> vector<16x1xf32>
    %204 = vector.broadcast %203 : vector<16x1xf32> to vector<16x16xf32>
    %205 = arith.mulf %200, %204 : vector<16x16xf32>
    %206 = arith.truncf %205 : vector<16x16xf32> to vector<16x16xbf16>
    %cst_68 = arith.constant dense<0.000000e+00> : vector<16x8xf32>
    %207 = tpu.matmul %206, %193, %cst_68 {dimension_numbers = #tpu.dot_dimension_numbers<[1], [0], [0], [1], [0, 0, 1, 1], [], []>} : vector<16x16xbf16>, vector<16x8xbf16>, vector<16x8xf32> -> vector<16x8xf32>
    %208 = vector.extract_strided_slice %23 {offsets = [0, 0], sizes = [8, 32], strides = [1, 1]} : vector<32x32xf32> to vector<8x32xf32>
    %209 = arith.truncf %208 : vector<8x32xf32> to vector<8x32xbf16>
    %210 = arith.truncf %207 : vector<16x8xf32> to vector<16x8xbf16>
    %cst_69 = arith.constant dense<0.000000e+00> : vector<16x32xf32>
    %211 = tpu.matmul %210, %209, %cst_69 {dimension_numbers = #tpu.dot_dimension_numbers<[1], [0], [0], [1], [0, 0, 1, 1], [], []>} : vector<16x8xbf16>, vector<8x32xbf16>, vector<16x32xf32> -> vector<16x32xf32>
    %212 = vector.extract_strided_slice %184 {offsets = [0, 8], sizes = [16, 8], strides = [1, 1]} : vector<16x32xf32> to vector<16x8xf32>
    %213 = arith.truncf %212 : vector<16x8xf32> to vector<16x8xbf16>
    %214 = vector.extract_strided_slice %187 {offsets = [0, 8], sizes = [16, 8], strides = [1, 1]} : vector<16x64xf32> to vector<16x8xf32>
    %215 = arith.truncf %214 : vector<16x8xf32> to vector<16x8xbf16>
    %216 = vector.extract_strided_slice %187 {offsets = [0, 40], sizes = [16, 8], strides = [1, 1]} : vector<16x64xf32> to vector<16x8xf32>
    %217 = arith.truncf %216 : vector<16x8xf32> to vector<16x8xbf16>
    %cst_70 = arith.constant dense<0.000000e+00> : vector<16x16xf32>
    %218 = tpu.matmul %213, %215, %cst_70 {dimension_numbers = #tpu.dot_dimension_numbers<[1], [1], [0], [0], [0, 0, 1, 0], [], []>} : vector<16x8xbf16>, vector<16x8xbf16>, vector<16x16xf32> -> vector<16x16xf32>
    %219 = arith.addf %218, %8 : vector<16x16xf32>
    %cst_71 = arith.constant dense<0xFF800000> : vector<16xf32>
    %220 = vector.multi_reduction <maximumf>, %219, %cst_71 [1] : vector<16x16xf32> to vector<16xf32>
    %221 = vector.shape_cast %220 : vector<16xf32> to vector<16x1xf32>
    %222 = vector.broadcast %221 : vector<16x1xf32> to vector<16x16xf32>
    %223 = arith.subf %219, %222 : vector<16x16xf32>
    %224 = math.exp %223 : vector<16x16xf32>
    %cst_72 = arith.constant dense<0.000000e+00> : vector<16xf32>
    %225 = vector.multi_reduction <add>, %224, %cst_72 [1] : vector<16x16xf32> to vector<16xf32>
    %226 = vector.shape_cast %225 : vector<16xf32> to vector<16x1xf32>
    %227 = tpu.reciprocal %226 {approx = true} : vector<16x1xf32> -> vector<16x1xf32>
    %228 = vector.broadcast %227 : vector<16x1xf32> to vector<16x16xf32>
    %229 = arith.mulf %224, %228 : vector<16x16xf32>
    %230 = arith.truncf %229 : vector<16x16xf32> to vector<16x16xbf16>
    %cst_73 = arith.constant dense<0.000000e+00> : vector<16x8xf32>
    %231 = tpu.matmul %230, %217, %cst_73 {dimension_numbers = #tpu.dot_dimension_numbers<[1], [0], [0], [1], [0, 0, 1, 1], [], []>} : vector<16x16xbf16>, vector<16x8xbf16>, vector<16x8xf32> -> vector<16x8xf32>
    %232 = vector.extract_strided_slice %23 {offsets = [8, 0], sizes = [8, 32], strides = [1, 1]} : vector<32x32xf32> to vector<8x32xf32>
    %233 = arith.truncf %232 : vector<8x32xf32> to vector<8x32xbf16>
    %234 = arith.truncf %231 : vector<16x8xf32> to vector<16x8xbf16>
    %cst_74 = arith.constant dense<0.000000e+00> : vector<16x32xf32>
    %235 = tpu.matmul %234, %233, %cst_74 {dimension_numbers = #tpu.dot_dimension_numbers<[1], [0], [0], [1], [0, 0, 1, 1], [], []>} : vector<16x8xbf16>, vector<8x32xbf16>, vector<16x32xf32> -> vector<16x32xf32>
    %236 = arith.addf %211, %235 : vector<16x32xf32>
    %237 = vector.extract_strided_slice %184 {offsets = [0, 16], sizes = [16, 8], strides = [1, 1]} : vector<16x32xf32> to vector<16x8xf32>
    %238 = arith.truncf %237 : vector<16x8xf32> to vector<16x8xbf16>
    %239 = vector.extract_strided_slice %187 {offsets = [0, 16], sizes = [16, 8], strides = [1, 1]} : vector<16x64xf32> to vector<16x8xf32>
    %240 = arith.truncf %239 : vector<16x8xf32> to vector<16x8xbf16>
    %241 = vector.extract_strided_slice %187 {offsets = [0, 48], sizes = [16, 8], strides = [1, 1]} : vector<16x64xf32> to vector<16x8xf32>
    %242 = arith.truncf %241 : vector<16x8xf32> to vector<16x8xbf16>
    %cst_75 = arith.constant dense<0.000000e+00> : vector<16x16xf32>
    %243 = tpu.matmul %238, %240, %cst_75 {dimension_numbers = #tpu.dot_dimension_numbers<[1], [1], [0], [0], [0, 0, 1, 0], [], []>} : vector<16x8xbf16>, vector<16x8xbf16>, vector<16x16xf32> -> vector<16x16xf32>
    %244 = arith.addf %243, %8 : vector<16x16xf32>
    %cst_76 = arith.constant dense<0xFF800000> : vector<16xf32>
    %245 = vector.multi_reduction <maximumf>, %244, %cst_76 [1] : vector<16x16xf32> to vector<16xf32>
    %246 = vector.shape_cast %245 : vector<16xf32> to vector<16x1xf32>
    %247 = vector.broadcast %246 : vector<16x1xf32> to vector<16x16xf32>
    %248 = arith.subf %244, %247 : vector<16x16xf32>
    %249 = math.exp %248 : vector<16x16xf32>
    %cst_77 = arith.constant dense<0.000000e+00> : vector<16xf32>
    %250 = vector.multi_reduction <add>, %249, %cst_77 [1] : vector<16x16xf32> to vector<16xf32>
    %251 = vector.shape_cast %250 : vector<16xf32> to vector<16x1xf32>
    %252 = tpu.reciprocal %251 {approx = true} : vector<16x1xf32> -> vector<16x1xf32>
    %253 = vector.broadcast %252 : vector<16x1xf32> to vector<16x16xf32>
    %254 = arith.mulf %249, %253 : vector<16x16xf32>
    %255 = arith.truncf %254 : vector<16x16xf32> to vector<16x16xbf16>
    %cst_78 = arith.constant dense<0.000000e+00> : vector<16x8xf32>
    %256 = tpu.matmul %255, %242, %cst_78 {dimension_numbers = #tpu.dot_dimension_numbers<[1], [0], [0], [1], [0, 0, 1, 1], [], []>} : vector<16x16xbf16>, vector<16x8xbf16>, vector<16x8xf32> -> vector<16x8xf32>
    %257 = vector.extract_strided_slice %23 {offsets = [16, 0], sizes = [8, 32], strides = [1, 1]} : vector<32x32xf32> to vector<8x32xf32>
    %258 = arith.truncf %257 : vector<8x32xf32> to vector<8x32xbf16>
    %259 = arith.truncf %256 : vector<16x8xf32> to vector<16x8xbf16>
    %cst_79 = arith.constant dense<0.000000e+00> : vector<16x32xf32>
    %260 = tpu.matmul %259, %258, %cst_79 {dimension_numbers = #tpu.dot_dimension_numbers<[1], [0], [0], [1], [0, 0, 1, 1], [], []>} : vector<16x8xbf16>, vector<8x32xbf16>, vector<16x32xf32> -> vector<16x32xf32>
    %261 = arith.addf %236, %260 : vector<16x32xf32>
    %262 = vector.extract_strided_slice %184 {offsets = [0, 24], sizes = [16, 8], strides = [1, 1]} : vector<16x32xf32> to vector<16x8xf32>
    %263 = arith.truncf %262 : vector<16x8xf32> to vector<16x8xbf16>
    %264 = vector.extract_strided_slice %187 {offsets = [0, 24], sizes = [16, 8], strides = [1, 1]} : vector<16x64xf32> to vector<16x8xf32>
    %265 = arith.truncf %264 : vector<16x8xf32> to vector<16x8xbf16>
    %266 = vector.extract_strided_slice %187 {offsets = [0, 56], sizes = [16, 8], strides = [1, 1]} : vector<16x64xf32> to vector<16x8xf32>
    %267 = arith.truncf %266 : vector<16x8xf32> to vector<16x8xbf16>
    %cst_80 = arith.constant dense<0.000000e+00> : vector<16x16xf32>
    %268 = tpu.matmul %263, %265, %cst_80 {dimension_numbers = #tpu.dot_dimension_numbers<[1], [1], [0], [0], [0, 0, 1, 0], [], []>} : vector<16x8xbf16>, vector<16x8xbf16>, vector<16x16xf32> -> vector<16x16xf32>
    %269 = arith.addf %268, %8 : vector<16x16xf32>
    %cst_81 = arith.constant dense<0xFF800000> : vector<16xf32>
    %270 = vector.multi_reduction <maximumf>, %269, %cst_81 [1] : vector<16x16xf32> to vector<16xf32>
    %271 = vector.shape_cast %270 : vector<16xf32> to vector<16x1xf32>
    %272 = vector.broadcast %271 : vector<16x1xf32> to vector<16x16xf32>
    %273 = arith.subf %269, %272 : vector<16x16xf32>
    %274 = math.exp %273 : vector<16x16xf32>
    %cst_82 = arith.constant dense<0.000000e+00> : vector<16xf32>
    %275 = vector.multi_reduction <add>, %274, %cst_82 [1] : vector<16x16xf32> to vector<16xf32>
    %276 = vector.shape_cast %275 : vector<16xf32> to vector<16x1xf32>
    %277 = tpu.reciprocal %276 {approx = true} : vector<16x1xf32> -> vector<16x1xf32>
    %278 = vector.broadcast %277 : vector<16x1xf32> to vector<16x16xf32>
    %279 = arith.mulf %274, %278 : vector<16x16xf32>
    %280 = arith.truncf %279 : vector<16x16xf32> to vector<16x16xbf16>
    %cst_83 = arith.constant dense<0.000000e+00> : vector<16x8xf32>
    %281 = tpu.matmul %280, %267, %cst_83 {dimension_numbers = #tpu.dot_dimension_numbers<[1], [0], [0], [1], [0, 0, 1, 1], [], []>} : vector<16x16xbf16>, vector<16x8xbf16>, vector<16x8xf32> -> vector<16x8xf32>
    %282 = vector.extract_strided_slice %23 {offsets = [24, 0], sizes = [8, 32], strides = [1, 1]} : vector<32x32xf32> to vector<8x32xf32>
    %283 = arith.truncf %282 : vector<8x32xf32> to vector<8x32xbf16>
    %284 = arith.truncf %281 : vector<16x8xf32> to vector<16x8xbf16>
    %cst_84 = arith.constant dense<0.000000e+00> : vector<16x32xf32>
    %285 = tpu.matmul %284, %283, %cst_84 {dimension_numbers = #tpu.dot_dimension_numbers<[1], [0], [0], [1], [0, 0, 1, 1], [], []>} : vector<16x8xbf16>, vector<8x32xbf16>, vector<16x32xf32> -> vector<16x32xf32>
    %286 = arith.addf %261, %285 : vector<16x32xf32>
    %287 = arith.addf %157, %286 : vector<16x32xf32>
    %288 = vector.broadcast %19 : vector<1x32xf32> to vector<16x32xf32>
    %289 = arith.addf %287, %288 : vector<16x32xf32>
    %cst_85 = arith.constant dense<0.000000e+00> : vector<16xf32>
    %290 = vector.multi_reduction <add>, %289, %cst_85 [1] : vector<16x32xf32> to vector<16xf32>
    %291 = vector.shape_cast %290 : vector<16xf32> to vector<16x1xf32>
    %cst_86 = arith.constant 3.200000e+01 : f32
    %292 = vector.broadcast %cst_86 : f32 to vector<16x1xf32>
    %293 = arith.divf %291, %292 : vector<16x1xf32>
    %294 = vector.broadcast %293 : vector<16x1xf32> to vector<16x32xf32>
    %295 = arith.subf %289, %294 : vector<16x32xf32>
    %296 = arith.mulf %295, %295 : vector<16x32xf32>
    %cst_87 = arith.constant dense<0.000000e+00> : vector<16xf32>
    %297 = vector.multi_reduction <add>, %296, %cst_87 [1] : vector<16x32xf32> to vector<16xf32>
    %298 = vector.shape_cast %297 : vector<16xf32> to vector<16x1xf32>
    %cst_88 = arith.constant 3.100000e+01 : f32
    %299 = vector.broadcast %cst_88 : f32 to vector<16x1xf32>
    %300 = arith.divf %298, %299 : vector<16x1xf32>
    %301 = math.sqrt %300 : vector<16x1xf32>
    %cst_89 = arith.constant 9.99999997E-7 : f32
    %302 = vector.broadcast %cst_89 : f32 to vector<16x1xf32>
    %303 = arith.addf %301, %302 : vector<16x1xf32>
    %304 = tpu.reciprocal %303 {approx = true} : vector<16x1xf32> -> vector<16x1xf32>
    %305 = vector.broadcast %293 : vector<16x1xf32> to vector<16x32xf32>
    %306 = arith.subf %289, %305 : vector<16x32xf32>
    %307 = vector.broadcast %13 : vector<1x32xf32> to vector<16x32xf32>
    %308 = arith.mulf %307, %306 : vector<16x32xf32>
    %309 = vector.broadcast %304 : vector<16x1xf32> to vector<16x32xf32>
    %310 = arith.mulf %308, %309 : vector<16x32xf32>
    %311 = vector.broadcast %14 : vector<1x32xf32> to vector<16x32xf32>
    %312 = arith.addf %310, %311 : vector<16x32xf32>
    %313 = arith.truncf %312 : vector<16x32xf32> to vector<16x32xbf16>
    %cst_90 = arith.constant dense<0.000000e+00> : vector<16x64xf32>
    %314 = tpu.matmul %313, %27, %cst_90 {dimension_numbers = #tpu.dot_dimension_numbers<[1], [0], [0], [1], [0, 0, 1, 1], [], []>} : vector<16x32xbf16>, vector<32x64xbf16>, vector<16x64xf32> -> vector<16x64xf32>
    %315 = vector.broadcast %20 : vector<1x64xf32> to vector<16x64xf32>
    %316 = arith.addf %314, %315 : vector<16x64xf32>
    %cst_91 = arith.constant 0.000000e+00 : f32
    %317 = vector.broadcast %cst_91 : f32 to vector<16x64xf32>
    %318 = arith.maximumf %316, %317 : vector<16x64xf32>
    %319 = arith.truncf %318 : vector<16x64xf32> to vector<16x64xbf16>
    %cst_92 = arith.constant dense<0.000000e+00> : vector<16x32xf32>
    %320 = tpu.matmul %319, %28, %cst_92 {dimension_numbers = #tpu.dot_dimension_numbers<[1], [0], [0], [1], [0, 0, 1, 1], [], []>} : vector<16x64xbf16>, vector<64x32xbf16>, vector<16x32xf32> -> vector<16x32xf32>
    %321 = arith.addf %289, %320 : vector<16x32xf32>
    %322 = vector.broadcast %21 : vector<1x32xf32> to vector<16x32xf32>
    %323 = arith.addf %321, %322 : vector<16x32xf32>
    %c0_93 = arith.constant 0 : index
    %c0_94 = arith.constant 0 : index
    %c0_95 = arith.constant 0 : index
    %324 = vector.load %arg7[%c0_93, %c0_94, %c0_95] : memref<1x16x32xf32, #tpu.memory_space<vmem>>, vector<1x16x32xf32>
    %325 = vector.shape_cast %324 : vector<1x16x32xf32> to vector<16x32xf32>
    %326 = vector.shape_cast %323 : vector<16x32xf32> to vector<1x16x32xf32>
    tpu.vector_store %arg7[%c0_93, %c0_94, %c0_95], %326 {strides = array<i32>} : memref<1x16x32xf32, #tpu.memory_space<vmem>>, vector<1x16x32xf32>,
    return
  }
  func.func @transform_0(%arg0: i32) -> (i32, i32, i32) {
    %c0_i32 = arith.constant 0 : i32
    %c0_i32_0 = arith.constant 0 : i32
    %c0_i32_1 = arith.constant 0 : i32
    return %arg0, %c0_i32, %c0_i32_0 : i32, i32, i32
  }
  func.func @transform_1(%arg0: i32) -> (i32, i32, i32) {
    %c0_i32 = arith.constant 0 : i32
    %c0_i32_0 = arith.constant 0 : i32
    %c0_i32_1 = arith.constant 0 : i32
    return %arg0, %c0_i32, %c0_i32_0 : i32, i32, i32
  }
  func.func @transform_2(%arg0: i32) -> (i32, i32, i32) {
    %c0_i32 = arith.constant 0 : i32
    %c0_i32_0 = arith.constant 0 : i32
    %c0_i32_1 = arith.constant 0 : i32
    return %arg0, %c0_i32, %c0_i32_0 : i32, i32, i32
  }
  func.func @transform_3(%arg0: i32) -> (i32, i32, i32) {
    %c0_i32 = arith.constant 0 : i32
    %c0_i32_0 = arith.constant 0 : i32
    %c0_i32_1 = arith.constant 0 : i32
    return %arg0, %c0_i32, %c0_i32_0 : i32, i32, i32
  }
  func.func @transform_4(%arg0: i32) -> (i32, i32) {
    %c0_i32 = arith.constant 0 : i32
    %c0_i32_0 = arith.constant 0 : i32
    %c0_i32_1 = arith.constant 0 : i32
    return %c0_i32, %c0_i32_0 : i32, i32
  }
  func.func @transform_5(%arg0: i32) -> (i32, i32) {
    %c0_i32 = arith.constant 0 : i32
    %c0_i32_0 = arith.constant 0 : i32
    %c0_i32_1 = arith.constant 0 : i32
    return %c0_i32, %c0_i32_0 : i32, i32
  }
  func.func @transform_6(%arg0: i32) -> (i32, i32, i32) {
    %c0_i32 = arith.constant 0 : i32
    %c0_i32_0 = arith.constant 0 : i32
    %c0_i32_1 = arith.constant 0 : i32
    return %arg0, %c0_i32, %c0_i32_0 : i32, i32, i32
  }
}

</mosaic_0001>

<llo_original>
// kernel: tpu_custom_call.1
$region0: #{tpu_custom_call.1}
  #allocation0 [shape = 'u32[]', space=smem, size = 0x4, offset = 0x4, fixed_abs, tag = 'smem constant byte address 0x4 - core index']
  #allocation1 [shape = 'u32[144,128]{1,0:T(1,128)}', space=vmem, size = 0x12000, scoped, tag = 'internal scratch']
  %s0 = inlined_call_operand.hbm [shape: f32[1,16,32], index: 0, kind: input, shape index: {}]
  %s1 = inlined_call_operand.hbm [shape: f32[1,16,32], index: 1, kind: input, shape index: {}]
  %s2 = inlined_call_operand.hbm [shape: f32[1,16,16], index: 2, kind: input, shape index: {}]
  %s3 = inlined_call_operand.hbm [shape: f32[1,16,16], index: 3, kind: input, shape index: {}]
  %s4 = inlined_call_operand.hbm [shape: f32[80,128], index: 4, kind: input, shape index: {}]
  %s5 = inlined_call_operand.hbm [shape: bf16[192,128], index: 5, kind: input, shape index: {}]
  %s6 = inlined_call_operand.hbm [shape: f32[1,16,32], index: 6, kind: output, shape index: {}]
  %s7 = sld [smem:[#allocation0]]
  $region58: #{tpu_custom_call.1} parent=0
    _
  %s9 = ssub.s32 1, %s7
  %s10 = scalar_select 0, %s9, %s7
  $region1: #{tpu_custom_call.1} parent=0
    #allocation2 [shape = 'u8[8192]{0}', space=vmem, size = 0x2000, scoped, tag = 'input window, operand 0, single buffered']
    #allocation3 [shape = 's32[1]{0}', space=sflag, size = 0x4, scoped, tag = 'scoped memory for tpu_custom_call.1']
    #allocation4 [shape = 's32[1]{0}', space=sflag, size = 0x4, scoped, tag = 'scoped memory for tpu_custom_call.1']
    #allocation5 [shape = 'u8[8192]{0}', space=vmem, size = 0x2000, scoped, tag = 'input window, operand 1, single buffered']
    #allocation6 [shape = 's32[1]{0}', space=sflag, size = 0x4, scoped, tag = 'scoped memory for tpu_custom_call.1']
    #allocation7 [shape = 'u8[8192]{0}', space=vmem, size = 0x2000, scoped, tag = 'input window, operand 2, single buffered']
    #allocation8 [shape = 'u8[8192]{0}', space=vmem, size = 0x2000, scoped, tag = 'input window, operand 3, single buffered']
    #allocation9 [shape = 's32[1]{0}', space=sflag, size = 0x4, scoped, tag = 'scoped memory for tpu_custom_call.1']
    #allocation10 [shape = 'u8[40960]{0}', space=vmem, size = 0xa000, scoped, tag = 'input window, operand 4, single buffered']
    #allocation11 [shape = 'u8[49152]{0}', space=vmem, size = 0xc000, scoped, tag = 'input window, operand 5, single buffered']
    #allocation12 [shape = 's32[1]{0}', space=sflag, size = 0x4, scoped, tag = 'scoped memory for tpu_custom_call.1']
    #allocation13 [shape = 'u8[8192]{0}', space=vmem, size = 0x2000, scoped, tag = 'output window, operand 0, single buffered']
    %11 = vsyncpa [#allocation3], 0
    %12 = vsyncpa [#allocation6], 0
    %13 = vsyncpa [#allocation9], 0
    %14 = vsyncpa [#allocation12], 0
    %15 = vsyncpa [#allocation4], 0
    // Predicated region
    $region2: #{tpu_custom_call.1} parent=1 // pred_check
      _
    $region3: #{tpu_custom_call.1} parent=1 // pred_check_branch
      %17 = sbr.rel (0) target = $region5
    $region4: #{tpu_custom_call.1} parent=1 // pred_region
      %s19 = ssub.s32 256, 256
      %20 = vsyncadd [#allocation3], %s19
      %s21 = sshll.u32 [#allocation2], 4
      %s22 = int_to_ptr.vmem [resolvable:$true] %s21
      %27 = dma.hbm_to_vmem [thread:$0]  %s0, 256, %s22, [#allocation3], 128, 128, 8
    $region5: #{tpu_custom_call.1} parent=1 // pred_fallthru
      _
    // Predicated region
    $region6: #{tpu_custom_call.1} parent=1 // pred_check
      _
    $region7: #{tpu_custom_call.1} parent=1 // pred_check_branch
      %29 = sbr.rel (0) target = $region9
    $region8: #{tpu_custom_call.1} parent=1 // pred_region
      %s31 = ssub.s32 256, 256
      %32 = vsyncadd [#allocation6], %s31
      %s33 = sshll.u32 [#allocation5], 4
      %s34 = int_to_ptr.vmem [resolvable:$true] %s33
      %39 = dma.hbm_to_vmem [thread:$0]  %s1, 256, %s34, [#allocation6], 128, 128, 8
    $region9: #{tpu_custom_call.1} parent=1 // pred_fallthru
      _
    // Predicated region
    $region10: #{tpu_custom_call.1} parent=1 // pred_check
      _
    $region11: #{tpu_custom_call.1} parent=1 // pred_check_branch
      %41 = sbr.rel (0) target = $region13
    $region12: #{tpu_custom_call.1} parent=1 // pred_region
      %s43 = ssub.s32 256, 256
      %44 = vsyncadd [#allocation6], %s43
      %s45 = sshll.u32 [#allocation7], 4
      %s46 = int_to_ptr.vmem [resolvable:$true] %s45
      %51 = dma.hbm_to_vmem [thread:$0]  %s2, 256, %s46, [#allocation6], 128, 128, 8
    $region13: #{tpu_custom_call.1} parent=1 // pred_fallthru
      _
    // Predicated region
    $region14: #{tpu_custom_call.1} parent=1 // pred_check
      _
    $region15: #{tpu_custom_call.1} parent=1 // pred_check_branch
      %53 = sbr.rel (0) target = $region17
    $region16: #{tpu_custom_call.1} parent=1 // pred_region
      %s55 = ssub.s32 256, 256
      %56 = vsyncadd [#allocation9], %s55
      %s57 = sshll.u32 [#allocation8], 4
      %s58 = int_to_ptr.vmem [resolvable:$true] %s57
      %63 = dma.hbm_to_vmem [thread:$0]  %s3, 256, %s58, [#allocation9], 128, 128, 8
    $region17: #{tpu_custom_call.1} parent=1 // pred_fallthru
      _
    // Predicated region
    $region18: #{tpu_custom_call.1} parent=1 // pred_check
      _
    $region19: #{tpu_custom_call.1} parent=1 // pred_check_branch
      %65 = sbr.rel (0) target = $region21
    $region20: #{tpu_custom_call.1} parent=1 // pred_region
      %s67 = ssub.s32 1280, 1280
      %68 = vsyncadd [#allocation9], %s67
      %s69 = sshll.u32 [#allocation10], 4
      %s70 = int_to_ptr.vmem [resolvable:$true] %s69
      %75 = dma.hbm_to_vmem [thread:$0]  %s4, 1280, %s70, [#allocation9], 128, 128, 8
    $region21: #{tpu_custom_call.1} parent=1 // pred_fallthru
      _
    // Predicated region
    $region22: #{tpu_custom_call.1} parent=1 // pred_check
      _
    $region23: #{tpu_custom_call.1} parent=1 // pred_check_branch
      %77 = sbr.rel (0) target = $region25
    $region24: #{tpu_custom_call.1} parent=1 // pred_region
      %s79 = ssub.s32 1536, 1536
      %80 = vsyncadd [#allocation12], %s79
      %s81 = sshll.u32 [#allocation11], 4
      %s82 = int_to_ptr.vmem [resolvable:$true] %s81
      %87 = dma.hbm_to_vmem [thread:$0]  %s5, 1536, %s82, [#allocation12], 64, 64, 4
    $region25: #{tpu_custom_call.1} parent=1 // pred_fallthru
      _
    // Predicated region
    $region26: #{tpu_custom_call.1} parent=1 // pred_check
      _
    $region27: #{tpu_custom_call.1} parent=1 // pred_check_branch
      %89 = sbr.rel (0) target = $region29
    $region28: #{tpu_custom_call.1} parent=1 // pred_region
      %90 = dma.done [#allocation3], 256
    $region29: #{tpu_custom_call.1} parent=1 // pred_fallthru
      _
    // Predicated region
    $region30: #{tpu_custom_call.1} parent=1 // pred_check
      _
    $region31: #{tpu_custom_call.1} parent=1 // pred_check_branch
      %92 = sbr.rel (0) target = $region33
    $region32: #{tpu_custom_call.1} parent=1 // pred_region
      %93 = dma.done [#allocation6], 256
    $region33: #{tpu_custom_call.1} parent=1 // pred_fallthru
      _
    // Predicated region
    $region34: #{tpu_custom_call.1} parent=1 // pred_check
      _
    $region35: #{tpu_custom_call.1} parent=1 // pred_check_branch
      %95 = sbr.rel (0) target = $region37
    $region36: #{tpu_custom_call.1} parent=1 // pred_region
      %96 = dma.done [#allocation6], 256
    $region37: #{tpu_custom_call.1} parent=1 // pred_fallthru
      _
    // Predicated region
    $region38: #{tpu_custom_call.1} parent=1 // pred_check
      _
    $region39: #{tpu_custom_call.1} parent=1 // pred_check_branch
      %98 = sbr.rel (0) target = $region41
    $region40: #{tpu_custom_call.1} parent=1 // pred_region
      %99 = dma.done [#allocation9], 256
    $region41: #{tpu_custom_call.1} parent=1 // pred_fallthru
      _
    // Predicated region
    $region42: #{tpu_custom_call.1} parent=1 // pred_check
      _
    $region43: #{tpu_custom_call.1} parent=1 // pred_check_branch
      %101 = sbr.rel (0) target = $region45
    $region44: #{tpu_custom_call.1} parent=1 // pred_region
      %102 = dma.done [#allocation9], 1280
    $region45: #{tpu_custom_call.1} parent=1 // pred_fallthru
      _
    // Predicated region
    $region46: #{tpu_custom_call.1} parent=1 // pred_check
      _
    $region47: #{tpu_custom_call.1} parent=1 // pred_check_branch
      %104 = sbr.rel (0) target = $region49
    $region48: #{tpu_custom_call.1} parent=1 // pred_region
      %105 = dma.done [#allocation12], 1536
    $region49: #{tpu_custom_call.1} parent=1 // pred_fallthru
      _
    %v107 = vld [vmem:[#allocation2] sm:$0xff]
    %v108 = vld [vmem:[#allocation2 + $0x8] sm:$0xff]
    %v109 = vld [vmem:[#allocation5] sm:$0xff]
    %v110 = vld [vmem:[#allocation5 + $0x8] sm:$0xff]
    %v111 = vpack.c.bf16 %v110, %v109
    %v112 = vld [vmem:[#allocation7] sm:$0xff]
    %v113 = vld [vmem:[#allocation7 + $0x8] sm:$0xff]
    %v114 = vld [vmem:[#allocation8] sm:$0xff]
    %v115 = vld [vmem:[#allocation8 + $0x8] sm:$0xff]
    %v116 = vld [vmem:[#allocation10] sm:$0x1]
    %v117 = vld [vmem:[#allocation10 + $0x1] sm:$0x1]
    %v118 = vld [vmem:[#allocation10 + $0x2] sm:$0x1]
    %v119 = vld [vmem:[#allocation10 + $0x3] sm:$0x1]
    %v120 = vld [vmem:[#allocation10 + $0x4] sm:$0x1]
    %v121 = vld [vmem:[#allocation10 + $0x5] sm:$0x1]
    %v122 = vld [vmem:[#allocation10 + $0x6] sm:$0x1]
    %v123 = vld [vmem:[#allocation10 + $0x7] sm:$0x1]
    %v124 = vld [vmem:[#allocation10 + $0x8] sm:$0x1]
    %v125 = vld [vmem:[#allocation10 + $0x9] sm:$0x1]
    %v126 = vld [vmem:[#allocation10 + $0xa] sm:$0x1]
    %v127 = vld [vmem:[#allocation10 + $0xb] sm:$0x1]
    %v128 = vld [vmem:[#allocation10 + $0xc] sm:$0x1]
    %v129 = vld [vmem:[#allocation10 + $0x10] sm:$0xff]
    %v130 = vld [vmem:[#allocation10 + $0x18] sm:$0xff]
    %v131 = vld [vmem:[#allocation10 + $0x20] sm:$0xff]
    %v132 = vld [vmem:[#allocation10 + $0x28] sm:$0xff]
    %v133 = vld [vmem:[#allocation10 + $0x30] sm:$0xff]
    %v134 = vld [vmem:[#allocation10 + $0x38] sm:$0xff]
    %v135 = vld [vmem:[#allocation10 + $0x40] sm:$0xff]
    %v136 = vld [vmem:[#allocation10 + $0x48] sm:$0xff]
    %v137 = vld [vmem:[#allocation11] sm:$0xf]
    %v138 = vld [vmem:[#allocation11 + $0x4] sm:$0xf]
    %v139 = vld [vmem:[#allocation11 + $0x8] sm:$0xf]
    %v140 = vld [vmem:[#allocation11 + $0xc] sm:$0xf]
    %v141 = vld [vmem:[#allocation11 + $0x10] sm:$0xf]
    %v142 = vld [vmem:[#allocation11 + $0x14] sm:$0xf]
    %v143 = vld [vmem:[#allocation11 + $0x18] sm:$0xf]
    %v144 = vld [vmem:[#allocation11 + $0x1c] sm:$0xf]
    %v145 = vld [vmem:[#allocation11 + $0x20] sm:$0xf]
    %v146 = vld [vmem:[#allocation11 + $0x24] sm:$0xf]
    %v147 = vld [vmem:[#allocation11 + $0x28] sm:$0xf]
    %v148 = vld [vmem:[#allocation11 + $0x2c] sm:$0xf]
    %v149 = vld [vmem:[#allocation11 + $0x30] sm:$0xf]
    %v150 = vld [vmem:[#allocation11 + $0x34] sm:$0xf]
    %v151 = vld [vmem:[#allocation11 + $0x38] sm:$0xf]
    %v152 = vld [vmem:[#allocation11 + $0x3c] sm:$0xf]
    %v153 = vld [vmem:[#allocation11 + $0x40] sm:$0xf]
    %v154 = vld [vmem:[#allocation11 + $0x44] sm:$0xf]
    %v155 = vld [vmem:[#allocation11 + $0x48] sm:$0xf]
    %v156 = vld [vmem:[#allocation11 + $0x4c] sm:$0xf]
    %v157 = vld [vmem:[#allocation11 + $0x50] sm:$0xf]
    %v158 = vld [vmem:[#allocation11 + $0x54] sm:$0xf]
    %v159 = vld [vmem:[#allocation11 + $0x58] sm:$0xf]
    %v160 = vld [vmem:[#allocation11 + $0x5c] sm:$0xf]
    %vm161 = vcmask 261120
    %v162 = vsel %vm161, %v107, 0.0
    %163 = vadd.xlane.f32.xlu0 %v162
    %v164 = vpop.xlane.xlu0 %163
    %v165 = vsel %vm161, %v108, 0.0
    %166 = vadd.xlane.f32.xlu0 %v165
    %v167 = vpop.xlane.xlu0 %166
    %v168 = vrcp.pop 32.0
    %v169 = vmul.f32 %v164, %v168
    %v170 = vmul.f32 %v167, %v168
    %v171 = vsub.f32 %v107, %v169
    %v172 = vsub.f32 %v108, %v170
    %v173 = vmul.f32 %v171, %v171
    %v174 = vmul.f32 %v172, %v172
    %v175 = vsel %vm161, %v173, 0.0
    %176 = vadd.xlane.f32.xlu0 %v175
    %v177 = vpop.xlane.xlu0 %176
    %v178 = vsel %vm161, %v174, 0.0
    %179 = vadd.xlane.f32.xlu0 %v178
    %v180 = vpop.xlane.xlu0 %179
    %v181 = vrcp.pop 31.0
    %v182 = vmul.f32 %v177, %v181
    %v183 = vmul.f32 %v180, %v181
    %v184 = vrsqrt.pop %v182
    %v185 = vmul.f32 %v182, %v184
    %vm186 = vcmp.eq.f32.partialorder %v182, inf
    %v187 = vsel %vm186, %v182, %v185
    %vm188 = vcmp.eq.f32.partialorder %v182, 0.0
    %v189 = vand.u32 %v182, 2147483648
    %v190 = vsel %vm188, %v189, %v187
    %v191 = vrsqrt.pop %v183
    %v192 = vmul.f32 %v183, %v191
    %vm193 = vcmp.eq.f32.partialorder %v183, inf
    %v194 = vsel %vm193, %v183, %v192
    %vm195 = vcmp.eq.f32.partialorder %v183, 0.0
    %v196 = vand.u32 %v183, 2147483648
    %v197 = vsel %vm195, %v196, %v194
    %v198 = vadd.f32 %v190, 1e-06
    %v199 = vadd.f32 %v197, 1e-06
    %v200 = vrcp.pop %v198
    %v201 = vrcp.pop %v199
    %v202 = vlaneseq
    %v203 = vshrl.u32 %v202, 7
    %v204 = vsub.s32 0, %v203
    %v205 = vrot.slane %v116, %v204
    %v206 = vmul.f32 %v205, %v171
    %v207 = vmul.f32 %v205, %v172
    %v208 = vmul.f32 %v206, %v200
    %v209 = vmul.f32 %v207, %v201
    %v210 = vlaneseq
    %v211 = vshrl.u32 %v210, 7
    %v212 = vsub.s32 0, %v211
    %v213 = vrot.slane %v117, %v212
    %v214 = vadd.f32 %v208, %v213
    %v215 = vadd.f32 %v209, %v213
    %v216 = vpack.c.bf16 %v215, %v214
    %v217 = vlaneseq
    %v218 = vshrl.u32 %v217, 7
    %v219 = vsub.s32 0, %v218
    %v220 = vrot.slane %v122, %v219
    %v225 = vunpack.c.l.b16 %v137
    %v226 = vunpack.c.l.b16 %v138
    %v227 = vunpack.c.l.b16 %v139
    %v228 = vunpack.c.l.b16 %v140
    %v229 = vpack.c.b16 %v226, %v225
    %v230 = vpack.c.b16 %v228, %v227
    %v234 = vsel %vm161, %v216, 0
    %236 = vmatprep.subr.bf16.mxu0 0
    %237 = vmatpush1.bf16.msra.mxu0 0
    %238 = vmatprep.subr.bf16.mxu0 0
    %239 = vmatpush1.bf16.msra.mxu0 0
    %240 = vmatprep.subr.bf16.mxu0 0
    %241 = vmatpush1.bf16.msra.mxu0 0
    %242 = vmatprep.subr.bf16.mxu0 0
    %243 = vmatpush1.bf16.msra.mxu0 0
    %244 = vmatprep.subr.bf16.mxu0 0
    %245 = vmatpush1.bf16.msra.mxu0 0
    %246 = vmatprep.subr.bf16.mxu0 0
    %247 = vmatpush1.bf16.msra.mxu0 0
    %248 = vmatprep.subr.bf16.mxu0 0
    %249 = vmatpush1.bf16.msra.mxu0 %v230
    %250 = vmatprep.subr.bf16.mxu0 0
    %251 = vmatpush1.bf16.msra.mxu0 %v229
    %252 = vmatprep.subr.bf16.mxu0 0
    %253 = vmatpush2.bf16.msra.mxu0 0
    %254 = vmatprep.subr.bf16.mxu0 0
    %255 = vmatpush2.bf16.msra.mxu0 0
    %256 = vmatprep.subr.bf16.mxu0 0
    %257 = vmatpush2.bf16.msra.mxu0 0
    %258 = vmatprep.subr.bf16.mxu0 0
    %259 = vmatpush2.bf16.msra.mxu0 0
    %260 = vmatprep.subr.bf16.mxu0 0
    %261 = vmatpush2.bf16.msra.mxu0 0
    %262 = vmatprep.subr.bf16.mxu0 0
    %263 = vmatpush2.bf16.msra.mxu0 0
    %264 = vmatprep.subr.bf16.mxu0 0
    %265 = vmatpush2.bf16.msra.mxu0 0
    %266 = vmatprep.subr.bf16.mxu0 0
    %267 = vmatpush2.bf16.msra.mxu0 0
    %268 = vmatprep.mubr.bf16.mxu0 0
    %269 = vmatmul.mubr.bf16.gmra.mxu0 %v234
    %v270 = vpop.f32.mrf.mxu0
    %v271 = vadd.f32 %v220, %v270
    %v272 = vpop.f32.mrf.mxu0
    %v273 = vpop.f32.mrf.mxu0
    %v274 = vadd.f32 %v220, %v273
    %v275 = vpop.f32.mrf.mxu0
    %276 = vdwg.mxu0
    %v277 = vpack.c.bf16 %v274, %v271
    %279 = vrot.lane.b32.xlu0 %v277, 96
    %v280 = vpop.permute.xlu0 %279
    %vm281 = vcmask 64512
    %v283 = vsel %vm281, %v277, 0
    %v286 = vsel %vm281, %v280, 0
    %288 = vmatprep.subr.bf16.mxu0 0
    %289 = vmatpush1.bf16.xpose.msra.mxu0 0
    %290 = vmatprep.subr.bf16.mxu0 0
    %291 = vmatpush1.bf16.xpose.msra.mxu0 0
    %292 = vmatprep.subr.bf16.mxu0 0
    %293 = vmatpush1.bf16.xpose.msra.mxu0 0
    %294 = vmatprep.subr.bf16.mxu0 0
    %295 = vmatpush1.bf16.xpose.msra.mxu0 0
    %296 = vmatprep.subr.bf16.mxu0 0
    %297 = vmatpush1.bf16.xpose.msra.mxu0 0
    %298 = vmatprep.subr.bf16.mxu0 0
    %299 = vmatpush1.bf16.xpose.msra.mxu0 0
    %300 = vmatprep.subr.bf16.mxu0 0
    %301 = vmatpush1.bf16.xpose.msra.mxu0 0
    %302 = vmatprep.subr.bf16.mxu0 0
    %303 = vmatpush1.bf16.xpose.msra.mxu0 %v286
    %304 = vmatprep.subr.bf16.mxu0 0
    %305 = vmatpush2.bf16.xpose.msra.mxu0 0
    %306 = vmatprep.subr.bf16.mxu0 0
    %307 = vmatpush2.bf16.xpose.msra.mxu0 0
    %308 = vmatprep.subr.bf16.mxu0 0
    %309 = vmatpush2.bf16.xpose.msra.mxu0 0
    %310 = vmatprep.subr.bf16.mxu0 0
    %311 = vmatpush2.bf16.xpose.msra.mxu0 0
    %312 = vmatprep.subr.bf16.mxu0 0
    %313 = vmatpush2.bf16.xpose.msra.mxu0 0
    %314 = vmatprep.subr.bf16.mxu0 0
    %315 = vmatpush2.bf16.xpose.msra.mxu0 0
    %316 = vmatprep.subr.bf16.mxu0 0
    %317 = vmatpush2.bf16.xpose.msra.mxu0 0
    %318 = vmatprep.subr.bf16.mxu0 0
    %319 = vmatpush2.bf16.xpose.msra.mxu0 0
    %320 = vmatprep.mubr.bf16.mxu0 0
    %321 = vmatmul.mubr.bf16.gmra.mxu0 %v283
    %v322 = vpop.f32.mrf.mxu0
    %v323 = vadd.f32 %v112, %v322
    %v324 = vpop.f32.mrf.mxu0
    %v325 = vpop.f32.mrf.mxu0
    %v326 = vadd.f32 %v113, %v325
    %v327 = vpop.f32.mrf.mxu0
    %328 = vdwg.mxu0
    %vm329 = vcmask 130048
    %v330 = vsel %vm329, %v323, -inf
    %331 = vmax.xlane.f32.xlu0 %v330
    %v332 = vpop.xlane.xlu0 %331
    %v333 = vsel %vm329, %v326, -inf
    %334 = vmax.xlane.f32.xlu0 %v333
    %v335 = vpop.xlane.xlu0 %334
    %v336 = vsub.f32 %v323, %v332
    %v337 = vsub.f32 %v326, %v335
    %v338 = vmul.f32 %v336, 1.442695
    %v339 = vpow.pop %v338
    %v340 = vmul.f32 %v337, 1.442695
    %v341 = vpow.pop %v340
    %v342 = vsel %vm329, %v339, 0.0
    %343 = vadd.xlane.f32.xlu0 %v342
    %v344 = vpop.xlane.xlu0 %343
    %v345 = vsel %vm329, %v341, 0.0
    %346 = vadd.xlane.f32.xlu0 %v345
    %v347 = vpop.xlane.xlu0 %346
    %v348 = vrcp.pop %v344
    %v349 = vrcp.pop %v347
    %v350 = vmul.f32 %v339, %v348
    %v351 = vmul.f32 %v341, %v349
    %v352 = vpack.c.bf16 %v351, %v350
    %353 = vrot.lane.b32.xlu0 %v277, 64
    %v354 = vpop.permute.xlu0 %353
    %v357 = vsel %vm329, %v352, 0
    %359 = vmatprep.subr.bf16.mxu0 0
    %360 = vmatpush1.bf16.msra.mxu0 0
    %361 = vmatprep.subr.bf16.mxu0 0
    %362 = vmatpush1.bf16.msra.mxu0 0
    %363 = vmatprep.subr.bf16.mxu0 0
    %364 = vmatpush1.bf16.msra.mxu0 0
    %365 = vmatprep.subr.bf16.mxu0 0
    %366 = vmatpush1.bf16.msra.mxu0 0
    %367 = vmatprep.subr.bf16.mxu0 0
    %368 = vmatpush1.bf16.msra.mxu0 0
    %369 = vmatprep.subr.bf16.mxu0 0
    %370 = vmatpush1.bf16.msra.mxu0 0
    %371 = vmatprep.subr.bf16.mxu0 0
    %372 = vmatpush1.bf16.msra.mxu0 0
    %373 = vmatprep.subr.bf16.mxu0 0
    %374 = vmatpush1.bf16.msra.mxu0 %v354
    %375 = vmatprep.subr.bf16.mxu0 0
    %376 = vmatpush2.bf16.msra.mxu0 0
    %377 = vmatprep.subr.bf16.mxu0 0
    %378 = vmatpush2.bf16.msra.mxu0 0
    %379 = vmatprep.subr.bf16.mxu0 0
    %380 = vmatpush2.bf16.msra.mxu0 0
    %381 = vmatprep.subr.bf16.mxu0 0
    %382 = vmatpush2.bf16.msra.mxu0 0
    %383 = vmatprep.subr.bf16.mxu0 0
    %384 = vmatpush2.bf16.msra.mxu0 0
    %385 = vmatprep.subr.bf16.mxu0 0
    %386 = vmatpush2.bf16.msra.mxu0 0
    %387 = vmatprep.subr.bf16.mxu0 0
    %388 = vmatpush2.bf16.msra.mxu0 0
    %389 = vmatprep.subr.bf16.mxu0 0
    %390 = vmatpush2.bf16.msra.mxu0 0
    %391 = vmatprep.mubr.bf16.mxu0 0
    %392 = vmatmul.mubr.bf16.gmra.mxu0 %v357
    %v393 = vpop.f32.mrf.mxu0
    %v394 = vadd.f32 0.0, %v393
    %v395 = vpop.f32.mrf.mxu0
    %v396 = vpop.f32.mrf.mxu0
    %v397 = vadd.f32 0.0, %v396
    %v398 = vpop.f32.mrf.mxu0
    %399 = vdwg.mxu0
    %v400 = vpack.c.bf16 %v129, %v129
    %v401 = vpack.c.bf16 %v397, %v394
    %402 = vrot.lane.b32.xlu0 %v277, 120
    %v403 = vpop.permute.xlu0 %402
    %404 = vrot.lane.b32.xlu0 %v277, 88
    %v405 = vpop.permute.xlu0 %404
    %v407 = vsel %vm281, %v403, 0
    %v410 = vsel %vm281, %v405, 0
    %412 = vmatprep.subr.bf16.mxu0 0
    %413 = vmatpush1.bf16.xpose.msra.mxu0 0
    %414 = vmatprep.subr.bf16.mxu0 0
    %415 = vmatpush1.bf16.xpose.msra.mxu0 0
    %416 = vmatprep.subr.bf16.mxu0 0
    %417 = vmatpush1.bf16.xpose.msra.mxu0 0
    %418 = vmatprep.subr.bf16.mxu0 0
    %419 = vmatpush1.bf16.xpose.msra.mxu0 0
    %420 = vmatprep.subr.bf16.mxu0 0
    %421 = vmatpush1.bf16.xpose.msra.mxu0 0
    %422 = vmatprep.subr.bf16.mxu0 0
    %423 = vmatpush1.bf16.xpose.msra.mxu0 0
    %424 = vmatprep.subr.bf16.mxu0 0
    %425 = vmatpush1.bf16.xpose.msra.mxu0 0
    %426 = vmatprep.subr.bf16.mxu0 0
    %427 = vmatpush1.bf16.xpose.msra.mxu0 %v410
    %428 = vmatprep.subr.bf16.mxu0 0
    %429 = vmatpush2.bf16.xpose.msra.mxu0 0
    %430 = vmatprep.subr.bf16.mxu0 0
    %431 = vmatpush2.bf16.xpose.msra.mxu0 0
    %432 = vmatprep.subr.bf16.mxu0 0
    %433 = vmatpush2.bf16.xpose.msra.mxu0 0
    %434 = vmatprep.subr.bf16.mxu0 0
    %435 = vmatpush2.bf16.xpose.msra.mxu0 0
    %436 = vmatprep.subr.bf16.mxu0 0
    %437 = vmatpush2.bf16.xpose.msra.mxu0 0
    %438 = vmatprep.subr.bf16.mxu0 0
    %439 = vmatpush2.bf16.xpose.msra.mxu0 0
    %440 = vmatprep.subr.bf16.mxu0 0
    %441 = vmatpush2.bf16.xpose.msra.mxu0 0
    %442 = vmatprep.subr.bf16.mxu0 0
    %443 = vmatpush2.bf16.xpose.msra.mxu0 0
    %444 = vmatprep.mubr.bf16.mxu0 0
    %445 = vmatmul.mubr.bf16.gmra.mxu0 %v407
    %v446 = vpop.f32.mrf.mxu0
    %v447 = vadd.f32 %v112, %v446
    %v448 = vpop.f32.mrf.mxu0
    %v449 = vpop.f32.mrf.mxu0
    %v450 = vadd.f32 %v113, %v449
    %v451 = vpop.f32.mrf.mxu0
    %452 = vdwg.mxu0
    %v453 = vsel %vm329, %v447, -inf
    %454 = vmax.xlane.f32.xlu0 %v453
    %v455 = vpop.xlane.xlu0 %454
    %v456 = vsel %vm329, %v450, -inf
    %457 = vmax.xlane.f32.xlu0 %v456
    %v458 = vpop.xlane.xlu0 %457
    %v459 = vsub.f32 %v447, %v455
    %v460 = vsub.f32 %v450, %v458
    %v461 = vmul.f32 %v459, 1.442695
    %v462 = vpow.pop %v461
    %v463 = vmul.f32 %v460, 1.442695
    %v464 = vpow.pop %v463
    %v465 = vsel %vm329, %v462, 0.0
    %466 = vadd.xlane.f32.xlu0 %v465
    %v467 = vpop.xlane.xlu0 %466
    %v468 = vsel %vm329, %v464, 0.0
    %469 = vadd.xlane.f32.xlu0 %v468
    %v470 = vpop.xlane.xlu0 %469
    %v471 = vrcp.pop %v467
    %v472 = vrcp.pop %v470
    %v473 = vmul.f32 %v462, %v471
    %v474 = vmul.f32 %v464, %v472
    %v475 = vpack.c.bf16 %v474, %v473
    %476 = vrot.lane.b32.xlu0 %v277, 56
    %v477 = vpop.permute.xlu0 %476
    %v480 = vsel %vm329, %v475, 0
    %482 = vmatprep.subr.bf16.mxu0 0
    %483 = vmatpush1.bf16.msra.mxu0 0
    %484 = vmatprep.subr.bf16.mxu0 0
    %485 = vmatpush1.bf16.msra.mxu0 0
    %486 = vmatprep.subr.bf16.mxu0 0
    %487 = vmatpush1.bf16.msra.mxu0 0
    %488 = vmatprep.subr.bf16.mxu0 0
    %489 = vmatpush1.bf16.msra.mxu0 0
    %490 = vmatprep.subr.bf16.mxu0 0
    %491 = vmatpush1.bf16.msra.mxu0 0
    %492 = vmatprep.subr.bf16.mxu0 0
    %493 = vmatpush1.bf16.msra.mxu0 0
    %494 = vmatprep.subr.bf16.mxu0 0
    %495 = vmatpush1.bf16.msra.mxu0 0
    %496 = vmatprep.subr.bf16.mxu0 0
    %497 = vmatpush1.bf16.msra.mxu0 %v477
    %498 = vmatprep.subr.bf16.mxu0 0
    %499 = vmatpush2.bf16.msra.mxu0 0
    %500 = vmatprep.subr.bf16.mxu0 0
    %501 = vmatpush2.bf16.msra.mxu0 0
    %502 = vmatprep.subr.bf16.mxu0 0
    %503 = vmatpush2.bf16.msra.mxu0 0
    %504 = vmatprep.subr.bf16.mxu0 0
    %505 = vmatpush2.bf16.msra.mxu0 0
    %506 = vmatprep.subr.bf16.mxu0 0
    %507 = vmatpush2.bf16.msra.mxu0 0
    %508 = vmatprep.subr.bf16.mxu0 0
    %509 = vmatpush2.bf16.msra.mxu0 0
    %510 = vmatprep.subr.bf16.mxu0 0
    %511 = vmatpush2.bf16.msra.mxu0 0
    %512 = vmatprep.subr.bf16.mxu0 0
    %513 = vmatpush2.bf16.msra.mxu0 0
    %514 = vmatprep.mubr.bf16.mxu0 0
    %515 = vmatmul.mubr.bf16.gmra.mxu0 %v480
    %v516 = vpop.f32.mrf.mxu0
    %v517 = vadd.f32 0.0, %v516
    %v518 = vpop.f32.mrf.mxu0
    %v519 = vpop.f32.mrf.mxu0
    %v520 = vadd.f32 0.0, %v519
    %v521 = vpop.f32.mrf.mxu0
    %522 = vdwg.mxu0
    %v523 = vpack.c.bf16 %v130, %v130
    %v524 = vpack.c.bf16 %v520, %v517
    %v526 = vsel %vm281, %v524, 0
    %vm528 = vcmask 1043456
    %v530 = vsel %vm528, %v523, 0
    %532 = vmatprep.subr.bf16.mxu0 0
    %533 = vmatpush1.bf16.msra.mxu0 0
    %534 = vmatprep.subr.bf16.mxu0 0
    %535 = vmatpush1.bf16.msra.mxu0 0
    %536 = vmatprep.subr.bf16.mxu0 0
    %537 = vmatpush1.bf16.msra.mxu0 0
    %538 = vmatprep.subr.bf16.mxu0 0
    %539 = vmatpush1.bf16.msra.mxu0 0
    %540 = vmatprep.subr.bf16.mxu0 0
    %541 = vmatpush1.bf16.msra.mxu0 0
    %542 = vmatprep.subr.bf16.mxu0 0
    %543 = vmatpush1.bf16.msra.mxu0 0
    %544 = vmatprep.subr.bf16.mxu0 0
    %545 = vmatpush1.bf16.msra.mxu0 0
    %546 = vmatprep.subr.bf16.mxu0 0
    %547 = vmatpush1.bf16.msra.mxu0 %v530
    %548 = vmatprep.subr.bf16.mxu0 0
    %549 = vmatpush2.bf16.msra.mxu0 0
    %550 = vmatprep.subr.bf16.mxu0 0
    %551 = vmatpush2.bf16.msra.mxu0 0
    %552 = vmatprep.subr.bf16.mxu0 0
    %553 = vmatpush2.bf16.msra.mxu0 0
    %554 = vmatprep.subr.bf16.mxu0 0
    %555 = vmatpush2.bf16.msra.mxu0 0
    %556 = vmatprep.subr.bf16.mxu0 0
    %557 = vmatpush2.bf16.msra.mxu0 0
    %558 = vmatprep.subr.bf16.mxu0 0
    %559 = vmatpush2.bf16.msra.mxu0 0
    %560 = vmatprep.subr.bf16.mxu0 0
    %561 = vmatpush2.bf16.msra.mxu0 0
    %562 = vmatprep.subr.bf16.mxu0 0
    %563 = vmatpush2.bf16.msra.mxu0 0
    %564 = vmatprep.mubr.bf16.mxu0 0
    %565 = vmatmul.mubr.bf16.gmra.mxu0 %v526
    %v566 = vpop.f32.mrf.mxu0
    %v567 = vadd.f32 0.0, %v566
    %v568 = vpop.f32.mrf.mxu0
    %v569 = vpop.f32.mrf.mxu0
    %v570 = vadd.f32 0.0, %v569
    %v571 = vpop.f32.mrf.mxu0
    %572 = vdwg.mxu0
    %v574 = vsel %vm281, %v401, 0
    %v577 = vsel %vm528, %v400, 0
    %579 = vmatprep.subr.bf16.mxu0 0
    %580 = vmatpush1.bf16.msra.mxu0 0
    %581 = vmatprep.subr.bf16.mxu0 0
    %582 = vmatpush1.bf16.msra.mxu0 0
    %583 = vmatprep.subr.bf16.mxu0 0
    %584 = vmatpush1.bf16.msra.mxu0 0
    %585 = vmatprep.subr.bf16.mxu0 0
    %586 = vmatpush1.bf16.msra.mxu0 0
    %587 = vmatprep.subr.bf16.mxu0 0
    %588 = vmatpush1.bf16.msra.mxu0 0
    %589 = vmatprep.subr.bf16.mxu0 0
    %590 = vmatpush1.bf16.msra.mxu0 0
    %591 = vmatprep.subr.bf16.mxu0 0
    %592 = vmatpush1.bf16.msra.mxu0 0
    %593 = vmatprep.subr.bf16.mxu0 0
    %594 = vmatpush1.bf16.msra.mxu0 %v577
    %595 = vmatprep.subr.bf16.mxu0 0
    %596 = vmatpush2.bf16.msra.mxu0 0
    %597 = vmatprep.subr.bf16.mxu0 0
    %598 = vmatpush2.bf16.msra.mxu0 0
    %599 = vmatprep.subr.bf16.mxu0 0
    %600 = vmatpush2.bf16.msra.mxu0 0
    %601 = vmatprep.subr.bf16.mxu0 0
    %602 = vmatpush2.bf16.msra.mxu0 0
    %603 = vmatprep.subr.bf16.mxu0 0
    %604 = vmatpush2.bf16.msra.mxu0 0
    %605 = vmatprep.subr.bf16.mxu0 0
    %606 = vmatpush2.bf16.msra.mxu0 0
    %607 = vmatprep.subr.bf16.mxu0 0
    %608 = vmatpush2.bf16.msra.mxu0 0
    %609 = vmatprep.subr.bf16.mxu0 0
    %610 = vmatpush2.bf16.msra.mxu0 0
    %611 = vmatprep.mubr.bf16.mxu0 0
    %612 = vmatmul.mubr.bf16.gmra.mxu0 %v574
    %v613 = vpop.f32.mrf.mxu0
    %v614 = vadd.f32 %v567, %v613
    %v615 = vpop.f32.mrf.mxu0
    %v616 = vpop.f32.mrf.mxu0
    %v617 = vadd.f32 %v570, %v616
    %v618 = vpop.f32.mrf.mxu0
    %619 = vdwg.mxu0
    %620 = vrot.lane.b32.xlu0 %v277, 112
    %v621 = vpop.permute.xlu0 %620
    %622 = vrot.lane.b32.xlu0 %v277, 80
    %v623 = vpop.permute.xlu0 %622
    %v625 = vsel %vm281, %v621, 0
    %v628 = vsel %vm281, %v623, 0
    %630 = vmatprep.subr.bf16.mxu0 0
    %631 = vmatpush1.bf16.xpose.msra.mxu0 0
    %632 = vmatprep.subr.bf16.mxu0 0
    %633 = vmatpush1.bf16.xpose.msra.mxu0 0
    %634 = vmatprep.subr.bf16.mxu0 0
    %635 = vmatpush1.bf16.xpose.msra.mxu0 0
    %636 = vmatprep.subr.bf16.mxu0 0
    %637 = vmatpush1.bf16.xpose.msra.mxu0 0
    %638 = vmatprep.subr.bf16.mxu0 0
    %639 = vmatpush1.bf16.xpose.msra.mxu0 0
    %640 = vmatprep.subr.bf16.mxu0 0
    %641 = vmatpush1.bf16.xpose.msra.mxu0 0
    %642 = vmatprep.subr.bf16.mxu0 0
    %643 = vmatpush1.bf16.xpose.msra.mxu0 0
    %644 = vmatprep.subr.bf16.mxu0 0
    %645 = vmatpush1.bf16.xpose.msra.mxu0 %v628
    %646 = vmatprep.subr.bf16.mxu0 0
    %647 = vmatpush2.bf16.xpose.msra.mxu0 0
    %648 = vmatprep.subr.bf16.mxu0 0
    %649 = vmatpush2.bf16.xpose.msra.mxu0 0
    %650 = vmatprep.subr.bf16.mxu0 0
    %651 = vmatpush2.bf16.xpose.msra.mxu0 0
    %652 = vmatprep.subr.bf16.mxu0 0
    %653 = vmatpush2.bf16.xpose.msra.mxu0 0
    %654 = vmatprep.subr.bf16.mxu0 0
    %655 = vmatpush2.bf16.xpose.msra.mxu0 0
    %656 = vmatprep.subr.bf16.mxu0 0
    %657 = vmatpush2.bf16.xpose.msra.mxu0 0
    %658 = vmatprep.subr.bf16.mxu0 0
    %659 = vmatpush2.bf16.xpose.msra.mxu0 0
    %660 = vmatprep.subr.bf16.mxu0 0
    %661 = vmatpush2.bf16.xpose.msra.mxu0 0
    %662 = vmatprep.mubr.bf16.mxu0 0
    %663 = vmatmul.mubr.bf16.gmra.mxu0 %v625
    %v664 = vpop.f32.mrf.mxu0
    %v665 = vadd.f32 %v112, %v664
    %v666 = vpop.f32.mrf.mxu0
    %v667 = vpop.f32.mrf.mxu0
    %v668 = vadd.f32 %v113, %v667
    %v669 = vpop.f32.mrf.mxu0
    %670 = vdwg.mxu0
    %v671 = vsel %vm329, %v665, -inf
    %672 = vmax.xlane.f32.xlu0 %v671
    %v673 = vpop.xlane.xlu0 %672
    %v674 = vsel %vm329, %v668, -inf
    %675 = vmax.xlane.f32.xlu0 %v674
    %v676 = vpop.xlane.xlu0 %675
    %v677 = vsub.f32 %v665, %v673
    %v678 = vsub.f32 %v668, %v676
    %v679 = vmul.f32 %v677, 1.442695
    %v680 = vpow.pop %v679
    %v681 = vmul.f32 %v678, 1.442695
    %v682 = vpow.pop %v681
    %v683 = vsel %vm329, %v680, 0.0
    %684 = vadd.xlane.f32.xlu0 %v683
    %v685 = vpop.xlane.xlu0 %684
    %v686 = vsel %vm329, %v682, 0.0
    %687 = vadd.xlane.f32.xlu0 %v686
    %v688 = vpop.xlane.xlu0 %687
    %v689 = vrcp.pop %v685
    %v690 = vrcp.pop %v688
    %v691 = vmul.f32 %v680, %v689
    %v692 = vmul.f32 %v682, %v690
    %v693 = vpack.c.bf16 %v692, %v691
    %694 = vrot.lane.b32.xlu0 %v277, 48
    %v695 = vpop.permute.xlu0 %694
    %v698 = vsel %vm329, %v693, 0
    %700 = vmatprep.subr.bf16.mxu0 0
    %701 = vmatpush1.bf16.msra.mxu0 0
    %702 = vmatprep.subr.bf16.mxu0 0
    %703 = vmatpush1.bf16.msra.mxu0 0
    %704 = vmatprep.subr.bf16.mxu0 0
    %705 = vmatpush1.bf16.msra.mxu0 0
    %706 = vmatprep.subr.bf16.mxu0 0
    %707 = vmatpush1.bf16.msra.mxu0 0
    %708 = vmatprep.subr.bf16.mxu0 0
    %709 = vmatpush1.bf16.msra.mxu0 0
    %710 = vmatprep.subr.bf16.mxu0 0
    %711 = vmatpush1.bf16.msra.mxu0 0
    %712 = vmatprep.subr.bf16.mxu0 0
    %713 = vmatpush1.bf16.msra.mxu0 0
    %714 = vmatprep.subr.bf16.mxu0 0
    %715 = vmatpush1.bf16.msra.mxu0 %v695
    %716 = vmatprep.subr.bf16.mxu0 0
    %717 = vmatpush2.bf16.msra.mxu0 0
    %718 = vmatprep.subr.bf16.mxu0 0
    %719 = vmatpush2.bf16.msra.mxu0 0
    %720 = vmatprep.subr.bf16.mxu0 0
    %721 = vmatpush2.bf16.msra.mxu0 0
    %722 = vmatprep.subr.bf16.mxu0 0
    %723 = vmatpush2.bf16.msra.mxu0 0
    %724 = vmatprep.subr.bf16.mxu0 0
    %725 = vmatpush2.bf16.msra.mxu0 0
    %726 = vmatprep.subr.bf16.mxu0 0
    %727 = vmatpush2.bf16.msra.mxu0 0
    %728 = vmatprep.subr.bf16.mxu0 0
    %729 = vmatpush2.bf16.msra.mxu0 0
    %730 = vmatprep.subr.bf16.mxu0 0
    %731 = vmatpush2.bf16.msra.mxu0 0
    %732 = vmatprep.mubr.bf16.mxu0 0
    %733 = vmatmul.mubr.bf16.gmra.mxu0 %v698
    %v734 = vpop.f32.mrf.mxu0
    %v735 = vadd.f32 0.0, %v734
    %v736 = vpop.f32.mrf.mxu0
    %v737 = vpop.f32.mrf.mxu0
    %v738 = vadd.f32 0.0, %v737
    %v739 = vpop.f32.mrf.mxu0
    %740 = vdwg.mxu0
    %v741 = vpack.c.bf16 %v131, %v131
    %v742 = vpack.c.bf16 %v738, %v735
    %v744 = vsel %vm281, %v742, 0
    %v747 = vsel %vm528, %v741, 0
    %749 = vmatprep.subr.bf16.mxu0 0
    %750 = vmatpush1.bf16.msra.mxu0 0
    %751 = vmatprep.subr.bf16.mxu0 0
    %752 = vmatpush1.bf16.msra.mxu0 0
    %753 = vmatprep.subr.bf16.mxu0 0
    %754 = vmatpush1.bf16.msra.mxu0 0
    %755 = vmatprep.subr.bf16.mxu0 0
    %756 = vmatpush1.bf16.msra.mxu0 0
    %757 = vmatprep.subr.bf16.mxu0 0
    %758 = vmatpush1.bf16.msra.mxu0 0
    %759 = vmatprep.subr.bf16.mxu0 0
    %760 = vmatpush1.bf16.msra.mxu0 0
    %761 = vmatprep.subr.bf16.mxu0 0
    %762 = vmatpush1.bf16.msra.mxu0 0
    %763 = vmatprep.subr.bf16.mxu0 0
    %764 = vmatpush1.bf16.msra.mxu0 %v747
    %765 = vmatprep.subr.bf16.mxu0 0
    %766 = vmatpush2.bf16.msra.mxu0 0
    %767 = vmatprep.subr.bf16.mxu0 0
    %768 = vmatpush2.bf16.msra.mxu0 0
    %769 = vmatprep.subr.bf16.mxu0 0
    %770 = vmatpush2.bf16.msra.mxu0 0
    %771 = vmatprep.subr.bf16.mxu0 0
    %772 = vmatpush2.bf16.msra.mxu0 0
    %773 = vmatprep.subr.bf16.mxu0 0
    %774 = vmatpush2.bf16.msra.mxu0 0
    %775 = vmatprep.subr.bf16.mxu0 0
    %776 = vmatpush2.bf16.msra.mxu0 0
    %777 = vmatprep.subr.bf16.mxu0 0
    %778 = vmatpush2.bf16.msra.mxu0 0
    %779 = vmatprep.subr.bf16.mxu0 0
    %780 = vmatpush2.bf16.msra.mxu0 0
    %781 = vmatprep.mubr.bf16.mxu0 0
    %782 = vmatmul.mubr.bf16.gmra.mxu0 %v744
    %v783 = vpop.f32.mrf.mxu0
    %v784 = vadd.f32 0.0, %v783
    %v785 = vpop.f32.mrf.mxu0
    %v786 = vpop.f32.mrf.mxu0
    %v787 = vadd.f32 0.0, %v786
    %v788 = vpop.f32.mrf.mxu0
    %789 = vdwg.mxu0
    %v790 = vadd.f32 %v614, %v784
    %v791 = vadd.f32 %v617, %v787
    %792 = vrot.lane.b32.xlu0 %v277, 104
    %v793 = vpop.permute.xlu0 %792
    %794 = vrot.lane.b32.xlu0 %v277, 72
    %v795 = vpop.permute.xlu0 %794
    %v797 = vsel %vm281, %v793, 0
    %v800 = vsel %vm281, %v795, 0
    %802 = vmatprep.subr.bf16.mxu0 0
    %803 = vmatpush1.bf16.xpose.msra.mxu0 0
    %804 = vmatprep.subr.bf16.mxu0 0
    %805 = vmatpush1.bf16.xpose.msra.mxu0 0
    %806 = vmatprep.subr.bf16.mxu0 0
    %807 = vmatpush1.bf16.xpose.msra.mxu0 0
    %808 = vmatprep.subr.bf16.mxu0 0
    %809 = vmatpush1.bf16.xpose.msra.mxu0 0
    %810 = vmatprep.subr.bf16.mxu0 0
    %811 = vmatpush1.bf16.xpose.msra.mxu0 0
    %812 = vmatprep.subr.bf16.mxu0 0
    %813 = vmatpush1.bf16.xpose.msra.mxu0 0
    %814 = vmatprep.subr.bf16.mxu0 0
    %815 = vmatpush1.bf16.xpose.msra.mxu0 0
    %816 = vmatprep.subr.bf16.mxu0 0
    %817 = vmatpush1.bf16.xpose.msra.mxu0 %v800
    %818 = vmatprep.subr.bf16.mxu0 0
    %819 = vmatpush2.bf16.xpose.msra.mxu0 0
    %820 = vmatprep.subr.bf16.mxu0 0
    %821 = vmatpush2.bf16.xpose.msra.mxu0 0
    %822 = vmatprep.subr.bf16.mxu0 0
    %823 = vmatpush2.bf16.xpose.msra.mxu0 0
    %824 = vmatprep.subr.bf16.mxu0 0
    %825 = vmatpush2.bf16.xpose.msra.mxu0 0
    %826 = vmatprep.subr.bf16.mxu0 0
    %827 = vmatpush2.bf16.xpose.msra.mxu0 0
    %828 = vmatprep.subr.bf16.mxu0 0
    %829 = vmatpush2.bf16.xpose.msra.mxu0 0
    %830 = vmatprep.subr.bf16.mxu0 0
    %831 = vmatpush2.bf16.xpose.msra.mxu0 0
    %832 = vmatprep.subr.bf16.mxu0 0
    %833 = vmatpush2.bf16.xpose.msra.mxu0 0
    %834 = vmatprep.mubr.bf16.mxu0 0
    %835 = vmatmul.mubr.bf16.gmra.mxu0 %v797
    %v836 = vpop.f32.mrf.mxu0
    %v837 = vadd.f32 %v112, %v836
    %v838 = vpop.f32.mrf.mxu0
    %v839 = vpop.f32.mrf.mxu0
    %v840 = vadd.f32 %v113, %v839
    %v841 = vpop.f32.mrf.mxu0
    %842 = vdwg.mxu0
    %v843 = vsel %vm329, %v837, -inf
    %844 = vmax.xlane.f32.xlu0 %v843
    %v845 = vpop.xlane.xlu0 %844
    %v846 = vsel %vm329, %v840, -inf
    %847 = vmax.xlane.f32.xlu0 %v846
    %v848 = vpop.xlane.xlu0 %847
    %v849 = vsub.f32 %v837, %v845
    %v850 = vsub.f32 %v840, %v848
    %v851 = vmul.f32 %v849, 1.442695
    %v852 = vpow.pop %v851
    %v853 = vmul.f32 %v850, 1.442695
    %v854 = vpow.pop %v853
    %v855 = vsel %vm329, %v852, 0.0
    %856 = vadd.xlane.f32.xlu0 %v855
    %v857 = vpop.xlane.xlu0 %856
    %v858 = vsel %vm329, %v854, 0.0
    %859 = vadd.xlane.f32.xlu0 %v858
    %v860 = vpop.xlane.xlu0 %859
    %v861 = vrcp.pop %v857
    %v862 = vrcp.pop %v860
    %v863 = vmul.f32 %v852, %v861
    %v864 = vmul.f32 %v854, %v862
    %v865 = vpack.c.bf16 %v864, %v863
    %866 = vrot.lane.b32.xlu0 %v277, 40
    %v867 = vpop.permute.xlu0 %866
    %v870 = vsel %vm329, %v865, 0
    %872 = vmatprep.subr.bf16.mxu0 0
    %873 = vmatpush1.bf16.msra.mxu0 0
    %874 = vmatprep.subr.bf16.mxu0 0
    %875 = vmatpush1.bf16.msra.mxu0 0
    %876 = vmatprep.subr.bf16.mxu0 0
    %877 = vmatpush1.bf16.msra.mxu0 0
    %878 = vmatprep.subr.bf16.mxu0 0
    %879 = vmatpush1.bf16.msra.mxu0 0
    %880 = vmatprep.subr.bf16.mxu0 0
    %881 = vmatpush1.bf16.msra.mxu0 0
    %882 = vmatprep.subr.bf16.mxu0 0
    %883 = vmatpush1.bf16.msra.mxu0 0
    %884 = vmatprep.subr.bf16.mxu0 0
    %885 = vmatpush1.bf16.msra.mxu0 0
    %886 = vmatprep.subr.bf16.mxu0 0
    %887 = vmatpush1.bf16.msra.mxu0 %v867
    %888 = vmatprep.subr.bf16.mxu0 0
    %889 = vmatpush2.bf16.msra.mxu0 0
    %890 = vmatprep.subr.bf16.mxu0 0
    %891 = vmatpush2.bf16.msra.mxu0 0
    %892 = vmatprep.subr.bf16.mxu0 0
    %893 = vmatpush2.bf16.msra.mxu0 0
    %894 = vmatprep.subr.bf16.mxu0 0
    %895 = vmatpush2.bf16.msra.mxu0 0
    %896 = vmatprep.subr.bf16.mxu0 0
    %897 = vmatpush2.bf16.msra.mxu0 0
    %898 = vmatprep.subr.bf16.mxu0 0
    %899 = vmatpush2.bf16.msra.mxu0 0
    %900 = vmatprep.subr.bf16.mxu0 0
    %901 = vmatpush2.bf16.msra.mxu0 0
    %902 = vmatprep.subr.bf16.mxu0 0
    %903 = vmatpush2.bf16.msra.mxu0 0
    %904 = vmatprep.mubr.bf16.mxu0 0
    %905 = vmatmul.mubr.bf16.gmra.mxu0 %v870
    %v906 = vpop.f32.mrf.mxu0
    %v907 = vadd.f32 0.0, %v906
    %v908 = vpop.f32.mrf.mxu0
    %v909 = vpop.f32.mrf.mxu0
    %v910 = vadd.f32 0.0, %v909
    %v911 = vpop.f32.mrf.mxu0
    %912 = vdwg.mxu0
    %v913 = vpack.c.bf16 %v132, %v132
    %v914 = vpack.c.bf16 %v910, %v907
    %v916 = vsel %vm281, %v914, 0
    %v919 = vsel %vm528, %v913, 0
    %921 = vmatprep.subr.bf16.mxu0 0
    %922 = vmatpush1.bf16.msra.mxu0 0
    %923 = vmatprep.subr.bf16.mxu0 0
    %924 = vmatpush1.bf16.msra.mxu0 0
    %925 = vmatprep.subr.bf16.mxu0 0
    %926 = vmatpush1.bf16.msra.mxu0 0
    %927 = vmatprep.subr.bf16.mxu0 0
    %928 = vmatpush1.bf16.msra.mxu0 0
    %929 = vmatprep.subr.bf16.mxu0 0
    %930 = vmatpush1.bf16.msra.mxu0 0
    %931 = vmatprep.subr.bf16.mxu0 0
    %932 = vmatpush1.bf16.msra.mxu0 0
    %933 = vmatprep.subr.bf16.mxu0 0
    %934 = vmatpush1.bf16.msra.mxu0 0
    %935 = vmatprep.subr.bf16.mxu0 0
    %936 = vmatpush1.bf16.msra.mxu0 %v919
    %937 = vmatprep.subr.bf16.mxu0 0
    %938 = vmatpush2.bf16.msra.mxu0 0
    %939 = vmatprep.subr.bf16.mxu0 0
    %940 = vmatpush2.bf16.msra.mxu0 0
    %941 = vmatprep.subr.bf16.mxu0 0
    %942 = vmatpush2.bf16.msra.mxu0 0
    %943 = vmatprep.subr.bf16.mxu0 0
    %944 = vmatpush2.bf16.msra.mxu0 0
    %945 = vmatprep.subr.bf16.mxu0 0
    %946 = vmatpush2.bf16.msra.mxu0 0
    %947 = vmatprep.subr.bf16.mxu0 0
    %948 = vmatpush2.bf16.msra.mxu0 0
    %949 = vmatprep.subr.bf16.mxu0 0
    %950 = vmatpush2.bf16.msra.mxu0 0
    %951 = vmatprep.subr.bf16.mxu0 0
    %952 = vmatpush2.bf16.msra.mxu0 0
    %953 = vmatprep.mubr.bf16.mxu0 0
    %954 = vmatmul.mubr.bf16.gmra.mxu0 %v916
    %v955 = vpop.f32.mrf.mxu0
    %v956 = vadd.f32 0.0, %v955
    %v957 = vpop.f32.mrf.mxu0
    %v958 = vpop.f32.mrf.mxu0
    %v959 = vadd.f32 0.0, %v958
    %v960 = vpop.f32.mrf.mxu0
    %961 = vdwg.mxu0
    %v962 = vadd.f32 %v790, %v956
    %v963 = vadd.f32 %v791, %v959
    %v964 = vadd.f32 %v107, %v962
    %v965 = vadd.f32 %v108, %v963
    %v966 = vlaneseq
    %v967 = vshrl.u32 %v966, 7
    %v968 = vsub.s32 0, %v967
    %v969 = vrot.slane %v123, %v968
    %v970 = vadd.f32 %v964, %v969
    %v971 = vadd.f32 %v965, %v969
    %v972 = vsel %vm161, %v970, 0.0
    %973 = vadd.xlane.f32.xlu0 %v972
    %v974 = vpop.xlane.xlu0 %973
    %v975 = vsel %vm161, %v971, 0.0
    %976 = vadd.xlane.f32.xlu0 %v975
    %v977 = vpop.xlane.xlu0 %976
    %v978 = vmul.f32 %v974, %v168
    %v979 = vmul.f32 %v977, %v168
    %v980 = vsub.f32 %v970, %v978
    %v981 = vsub.f32 %v971, %v979
    %v982 = vmul.f32 %v980, %v980
    %v983 = vmul.f32 %v981, %v981
    %v984 = vsel %vm161, %v982, 0.0
    %985 = vadd.xlane.f32.xlu0 %v984
    %v986 = vpop.xlane.xlu0 %985
    %v987 = vsel %vm161, %v983, 0.0
    %988 = vadd.xlane.f32.xlu0 %v987
    %v989 = vpop.xlane.xlu0 %988
    %v990 = vmul.f32 %v986, %v181
    %v991 = vmul.f32 %v989, %v181
    %v992 = vrsqrt.pop %v990
    %v993 = vmul.f32 %v990, %v992
    %vm994 = vcmp.eq.f32.partialorder %v990, inf
    %v995 = vsel %vm994, %v990, %v993
    %vm996 = vcmp.eq.f32.partialorder %v990, 0.0
    %v997 = vand.u32 %v990, 2147483648
    %v998 = vsel %vm996, %v997, %v995
    %v999 = vrsqrt.pop %v991
    %v1000 = vmul.f32 %v991, %v999
    %vm1001 = vcmp.eq.f32.partialorder %v991, inf
    %v1002 = vsel %vm1001, %v991, %v1000
    %vm1003 = vcmp.eq.f32.partialorder %v991, 0.0
    %v1004 = vand.u32 %v991, 2147483648
    %v1005 = vsel %vm1003, %v1004, %v1002
    %v1006 = vadd.f32 %v998, 1e-06
    %v1007 = vadd.f32 %v1005, 1e-06
    %v1008 = vrcp.pop %v1006
    %v1009 = vrcp.pop %v1007
    %v1010 = vlaneseq
    %v1011 = vshrl.u32 %v1010, 7
    %v1012 = vsub.s32 0, %v1011
    %v1013 = vrot.slane %v118, %v1012
    %v1014 = vmul.f32 %v1013, %v980
    %v1015 = vmul.f32 %v1013, %v981
    %v1016 = vmul.f32 %v1014, %v1008
    %v1017 = vmul.f32 %v1015, %v1009
    %v1018 = vlaneseq
    %v1019 = vshrl.u32 %v1018, 7
    %v1020 = vsub.s32 0, %v1019
    %v1021 = vrot.slane %v119, %v1020
    %v1022 = vadd.f32 %v1016, %v1021
    %v1023 = vadd.f32 %v1017, %v1021
    %v1024 = vpack.c.bf16 %v1023, %v1022
    %v1025 = vlaneseq
    %v1026 = vshrl.u32 %v1025, 7
    %v1027 = vsub.s32 0, %v1026
    %v1028 = vrot.slane %v124, %v1027
    %v1033 = vunpack.c.l.b16 %v141
    %v1034 = vunpack.c.l.b16 %v142
    %v1035 = vunpack.c.l.b16 %v143
    %v1036 = vunpack.c.l.b16 %v144
    %v1037 = vpack.c.b16 %v1034, %v1033
    %v1038 = vpack.c.b16 %v1036, %v1035
    %v1042 = vsel %vm161, %v1024, 0
    %1044 = vmatprep.subr.bf16.mxu0 0
    %1045 = vmatpush1.bf16.msra.mxu0 0
    %1046 = vmatprep.subr.bf16.mxu0 0
    %1047 = vmatpush1.bf16.msra.mxu0 0
    %1048 = vmatprep.subr.bf16.mxu0 0
    %1049 = vmatpush1.bf16.msra.mxu0 0
    %1050 = vmatprep.subr.bf16.mxu0 0
    %1051 = vmatpush1.bf16.msra.mxu0 0
    %1052 = vmatprep.subr.bf16.mxu0 0
    %1053 = vmatpush1.bf16.msra.mxu0 0
    %1054 = vmatprep.subr.bf16.mxu0 0
    %1055 = vmatpush1.bf16.msra.mxu0 0
    %1056 = vmatprep.subr.bf16.mxu0 0
    %1057 = vmatpush1.bf16.msra.mxu0 %v1038
    %1058 = vmatprep.subr.bf16.mxu0 0
    %1059 = vmatpush1.bf16.msra.mxu0 %v1037
    %1060 = vmatprep.subr.bf16.mxu0 0
    %1061 = vmatpush2.bf16.msra.mxu0 0
    %1062 = vmatprep.subr.bf16.mxu0 0
    %1063 = vmatpush2.bf16.msra.mxu0 0
    %1064 = vmatprep.subr.bf16.mxu0 0
    %1065 = vmatpush2.bf16.msra.mxu0 0
    %1066 = vmatprep.subr.bf16.mxu0 0
    %1067 = vmatpush2.bf16.msra.mxu0 0
    %1068 = vmatprep.subr.bf16.mxu0 0
    %1069 = vmatpush2.bf16.msra.mxu0 0
    %1070 = vmatprep.subr.bf16.mxu0 0
    %1071 = vmatpush2.bf16.msra.mxu0 0
    %1072 = vmatprep.subr.bf16.mxu0 0
    %1073 = vmatpush2.bf16.msra.mxu0 0
    %1074 = vmatprep.subr.bf16.mxu0 0
    %1075 = vmatpush2.bf16.msra.mxu0 0
    %1076 = vmatprep.mubr.bf16.mxu0 0
    %1077 = vmatmul.mubr.bf16.gmra.mxu0 %v1042
    %v1078 = vpop.f32.mrf.mxu0
    %v1079 = vadd.f32 %v1028, %v1078
    %v1080 = vpop.f32.mrf.mxu0
    %v1081 = vpop.f32.mrf.mxu0
    %v1082 = vadd.f32 %v1028, %v1081
    %v1083 = vpop.f32.mrf.mxu0
    %1084 = vdwg.mxu0
    %v1085 = vlaneseq
    %v1086 = vshrl.u32 %v1085, 7
    %v1087 = vsub.s32 0, %v1086
    %v1088 = vrot.slane %v125, %v1087
    %v1093 = vunpack.c.l.b16 %v145
    %v1094 = vunpack.c.l.b16 %v146
    %v1095 = vunpack.c.l.b16 %v147
    %v1096 = vunpack.c.l.b16 %v148
    %v1097 = vpack.c.b16 %v1094, %v1093
    %v1098 = vpack.c.b16 %v1096, %v1095
    %v1102 = vsel %vm161, %v111, 0
    %1104 = vmatprep.subr.bf16.mxu0 0
    %1105 = vmatpush1.bf16.msra.mxu0 0
    %1106 = vmatprep.subr.bf16.mxu0 0
    %1107 = vmatpush1.bf16.msra.mxu0 0
    %1108 = vmatprep.subr.bf16.mxu0 0
    %1109 = vmatpush1.bf16.msra.mxu0 0
    %1110 = vmatprep.subr.bf16.mxu0 0
    %1111 = vmatpush1.bf16.msra.mxu0 0
    %1112 = vmatprep.subr.bf16.mxu0 0
    %1113 = vmatpush1.bf16.msra.mxu0 0
    %1114 = vmatprep.subr.bf16.mxu0 0
    %1115 = vmatpush1.bf16.msra.mxu0 0
    %1116 = vmatprep.subr.bf16.mxu0 0
    %1117 = vmatpush1.bf16.msra.mxu0 %v1098
    %1118 = vmatprep.subr.bf16.mxu0 0
    %1119 = vmatpush1.bf16.msra.mxu0 %v1097
    %1120 = vmatprep.subr.bf16.mxu0 0
    %1121 = vmatpush2.bf16.msra.mxu0 0
    %1122 = vmatprep.subr.bf16.mxu0 0
    %1123 = vmatpush2.bf16.msra.mxu0 0
    %1124 = vmatprep.subr.bf16.mxu0 0
    %1125 = vmatpush2.bf16.msra.mxu0 0
    %1126 = vmatprep.subr.bf16.mxu0 0
    %1127 = vmatpush2.bf16.msra.mxu0 0
    %1128 = vmatprep.subr.bf16.mxu0 0
    %1129 = vmatpush2.bf16.msra.mxu0 0
    %1130 = vmatprep.subr.bf16.mxu0 0
    %1131 = vmatpush2.bf16.msra.mxu0 0
    %1132 = vmatprep.subr.bf16.mxu0 0
    %1133 = vmatpush2.bf16.msra.mxu0 0
    %1134 = vmatprep.subr.bf16.mxu0 0
    %1135 = vmatpush2.bf16.msra.mxu0 0
    %1136 = vmatprep.mubr.bf16.mxu0 0
    %1137 = vmatmul.mubr.bf16.gmra.mxu0 %v1102
    %v1138 = vpop.f32.mrf.mxu0
    %v1139 = vadd.f32 %v1088, %v1138
    %v1140 = vpop.f32.mrf.mxu0
    %v1141 = vpop.f32.mrf.mxu0
    %v1142 = vadd.f32 %v1088, %v1141
    %v1143 = vpop.f32.mrf.mxu0
    %1144 = vdwg.mxu0
    %v1145 = vpack.c.bf16 %v1082, %v1079
    %v1146 = vpack.c.bf16 %v1142, %v1139
    %v1148 = vsel %vm281, %v1145, 0
    %v1151 = vsel %vm281, %v1146, 0
    %1153 = vmatprep.subr.bf16.mxu0 0
    %1154 = vmatpush1.bf16.xpose.msra.mxu0 0
    %1155 = vmatprep.subr.bf16.mxu0 0
    %1156 = vmatpush1.bf16.xpose.msra.mxu0 0
    %1157 = vmatprep.subr.bf16.mxu0 0
    %1158 = vmatpush1.bf16.xpose.msra.mxu0 0
    %1159 = vmatprep.subr.bf16.mxu0 0
    %1160 = vmatpush1.bf16.xpose.msra.mxu0 0
    %1161 = vmatprep.subr.bf16.mxu0 0
    %1162 = vmatpush1.bf16.xpose.msra.mxu0 0
    %1163 = vmatprep.subr.bf16.mxu0 0
    %1164 = vmatpush1.bf16.xpose.msra.mxu0 0
    %1165 = vmatprep.subr.bf16.mxu0 0
    %1166 = vmatpush1.bf16.xpose.msra.mxu0 0
    %1167 = vmatprep.subr.bf16.mxu0 0
    %1168 = vmatpush1.bf16.xpose.msra.mxu0 %v1151
    %1169 = vmatprep.subr.bf16.mxu0 0
    %1170 = vmatpush2.bf16.xpose.msra.mxu0 0
    %1171 = vmatprep.subr.bf16.mxu0 0
    %1172 = vmatpush2.bf16.xpose.msra.mxu0 0
    %1173 = vmatprep.subr.bf16.mxu0 0
    %1174 = vmatpush2.bf16.xpose.msra.mxu0 0
    %1175 = vmatprep.subr.bf16.mxu0 0
    %1176 = vmatpush2.bf16.xpose.msra.mxu0 0
    %1177 = vmatprep.subr.bf16.mxu0 0
    %1178 = vmatpush2.bf16.xpose.msra.mxu0 0
    %1179 = vmatprep.subr.bf16.mxu0 0
    %1180 = vmatpush2.bf16.xpose.msra.mxu0 0
    %1181 = vmatprep.subr.bf16.mxu0 0
    %1182 = vmatpush2.bf16.xpose.msra.mxu0 0
    %1183 = vmatprep.subr.bf16.mxu0 0
    %1184 = vmatpush2.bf16.xpose.msra.mxu0 0
    %1185 = vmatprep.mubr.bf16.mxu0 0
    %1186 = vmatmul.mubr.bf16.gmra.mxu0 %v1148
    %v1187 = vpop.f32.mrf.mxu0
    %v1188 = vadd.f32 %v114, %v1187
    %v1189 = vpop.f32.mrf.mxu0
    %v1190 = vpop.f32.mrf.mxu0
    %v1191 = vadd.f32 %v115, %v1190
    %v1192 = vpop.f32.mrf.mxu0
    %1193 = vdwg.mxu0
    %v1194 = vsel %vm329, %v1188, -inf
    %1195 = vmax.xlane.f32.xlu0 %v1194
    %v1196 = vpop.xlane.xlu0 %1195
    %v1197 = vsel %vm329, %v1191, -inf
    %1198 = vmax.xlane.f32.xlu0 %v1197
    %v1199 = vpop.xlane.xlu0 %1198
    %v1200 = vsub.f32 %v1188, %v1196
    %v1201 = vsub.f32 %v1191, %v1199
    %v1202 = vmul.f32 %v1200, 1.442695
    %v1203 = vpow.pop %v1202
    %v1204 = vmul.f32 %v1201, 1.442695
    %v1205 = vpow.pop %v1204
    %v1206 = vsel %vm329, %v1203, 0.0
    %1207 = vadd.xlane.f32.xlu0 %v1206
    %v1208 = vpop.xlane.xlu0 %1207
    %v1209 = vsel %vm329, %v1205, 0.0
    %1210 = vadd.xlane.f32.xlu0 %v1209
    %v1211 = vpop.xlane.xlu0 %1210
    %v1212 = vrcp.pop %v1208
    %v1213 = vrcp.pop %v1211
    %v1214 = vmul.f32 %v1203, %v1212
    %v1215 = vmul.f32 %v1205, %v1213
    %v1216 = vpack.c.bf16 %v1215, %v1214
    %1218 = vrot.lane.b32.xlu0 %v1146, 96
    %v1219 = vpop.permute.xlu0 %1218
    %v1222 = vsel %vm329, %v1216, 0
    %1224 = vmatprep.subr.bf16.mxu0 0
    %1225 = vmatpush1.bf16.msra.mxu0 0
    %1226 = vmatprep.subr.bf16.mxu0 0
    %1227 = vmatpush1.bf16.msra.mxu0 0
    %1228 = vmatprep.subr.bf16.mxu0 0
    %1229 = vmatpush1.bf16.msra.mxu0 0
    %1230 = vmatprep.subr.bf16.mxu0 0
    %1231 = vmatpush1.bf16.msra.mxu0 0
    %1232 = vmatprep.subr.bf16.mxu0 0
    %1233 = vmatpush1.bf16.msra.mxu0 0
    %1234 = vmatprep.subr.bf16.mxu0 0
    %1235 = vmatpush1.bf16.msra.mxu0 0
    %1236 = vmatprep.subr.bf16.mxu0 0
    %1237 = vmatpush1.bf16.msra.mxu0 0
    %1238 = vmatprep.subr.bf16.mxu0 0
    %1239 = vmatpush1.bf16.msra.mxu0 %v1219
    %1240 = vmatprep.subr.bf16.mxu0 0
    %1241 = vmatpush2.bf16.msra.mxu0 0
    %1242 = vmatprep.subr.bf16.mxu0 0
    %1243 = vmatpush2.bf16.msra.mxu0 0
    %1244 = vmatprep.subr.bf16.mxu0 0
    %1245 = vmatpush2.bf16.msra.mxu0 0
    %1246 = vmatprep.subr.bf16.mxu0 0
    %1247 = vmatpush2.bf16.msra.mxu0 0
    %1248 = vmatprep.subr.bf16.mxu0 0
    %1249 = vmatpush2.bf16.msra.mxu0 0
    %1250 = vmatprep.subr.bf16.mxu0 0
    %1251 = vmatpush2.bf16.msra.mxu0 0
    %1252 = vmatprep.subr.bf16.mxu0 0
    %1253 = vmatpush2.bf16.msra.mxu0 0
    %1254 = vmatprep.subr.bf16.mxu0 0
    %1255 = vmatpush2.bf16.msra.mxu0 0
    %1256 = vmatprep.mubr.bf16.mxu0 0
    %1257 = vmatmul.mubr.bf16.gmra.mxu0 %v1222
    %v1258 = vpop.f32.mrf.mxu0
    %v1259 = vadd.f32 0.0, %v1258
    %v1260 = vpop.f32.mrf.mxu0
    %v1261 = vpop.f32.mrf.mxu0
    %v1262 = vadd.f32 0.0, %v1261
    %v1263 = vpop.f32.mrf.mxu0
    %1264 = vdwg.mxu0
    %v1265 = vpack.c.bf16 %v133, %v133
    %v1266 = vpack.c.bf16 %v1262, %v1259
    %1268 = vrot.lane.b32.xlu0 %v1145, 120
    %v1269 = vpop.permute.xlu0 %1268
    %1270 = vrot.lane.b32.xlu0 %v1146, 120
    %v1271 = vpop.permute.xlu0 %1270
    %v1273 = vsel %vm281, %v1269, 0
    %v1276 = vsel %vm281, %v1271, 0
    %1278 = vmatprep.subr.bf16.mxu0 0
    %1279 = vmatpush1.bf16.xpose.msra.mxu0 0
    %1280 = vmatprep.subr.bf16.mxu0 0
    %1281 = vmatpush1.bf16.xpose.msra.mxu0 0
    %1282 = vmatprep.subr.bf16.mxu0 0
    %1283 = vmatpush1.bf16.xpose.msra.mxu0 0
    %1284 = vmatprep.subr.bf16.mxu0 0
    %1285 = vmatpush1.bf16.xpose.msra.mxu0 0
    %1286 = vmatprep.subr.bf16.mxu0 0
    %1287 = vmatpush1.bf16.xpose.msra.mxu0 0
    %1288 = vmatprep.subr.bf16.mxu0 0
    %1289 = vmatpush1.bf16.xpose.msra.mxu0 0
    %1290 = vmatprep.subr.bf16.mxu0 0
    %1291 = vmatpush1.bf16.xpose.msra.mxu0 0
    %1292 = vmatprep.subr.bf16.mxu0 0
    %1293 = vmatpush1.bf16.xpose.msra.mxu0 %v1276
    %1294 = vmatprep.subr.bf16.mxu0 0
    %1295 = vmatpush2.bf16.xpose.msra.mxu0 0
    %1296 = vmatprep.subr.bf16.mxu0 0
    %1297 = vmatpush2.bf16.xpose.msra.mxu0 0
    %1298 = vmatprep.subr.bf16.mxu0 0
    %1299 = vmatpush2.bf16.xpose.msra.mxu0 0
    %1300 = vmatprep.subr.bf16.mxu0 0
    %1301 = vmatpush2.bf16.xpose.msra.mxu0 0
    %1302 = vmatprep.subr.bf16.mxu0 0
    %1303 = vmatpush2.bf16.xpose.msra.mxu0 0
    %1304 = vmatprep.subr.bf16.mxu0 0
    %1305 = vmatpush2.bf16.xpose.msra.mxu0 0
    %1306 = vmatprep.subr.bf16.mxu0 0
    %1307 = vmatpush2.bf16.xpose.msra.mxu0 0
    %1308 = vmatprep.subr.bf16.mxu0 0
    %1309 = vmatpush2.bf16.xpose.msra.mxu0 0
    %1310 = vmatprep.mubr.bf16.mxu0 0
    %1311 = vmatmul.mubr.bf16.gmra.mxu0 %v1273
    %v1312 = vpop.f32.mrf.mxu0
    %v1313 = vadd.f32 %v114, %v1312
    %v1314 = vpop.f32.mrf.mxu0
    %v1315 = vpop.f32.mrf.mxu0
    %v1316 = vadd.f32 %v115, %v1315
    %v1317 = vpop.f32.mrf.mxu0
    %1318 = vdwg.mxu0
    %v1319 = vsel %vm329, %v1313, -inf
    %1320 = vmax.xlane.f32.xlu0 %v1319
    %v1321 = vpop.xlane.xlu0 %1320
    %v1322 = vsel %vm329, %v1316, -inf
    %1323 = vmax.xlane.f32.xlu0 %v1322
    %v1324 = vpop.xlane.xlu0 %1323
    %v1325 = vsub.f32 %v1313, %v1321
    %v1326 = vsub.f32 %v1316, %v1324
    %v1327 = vmul.f32 %v1325, 1.442695
    %v1328 = vpow.pop %v1327
    %v1329 = vmul.f32 %v1326, 1.442695
    %v1330 = vpow.pop %v1329
    %v1331 = vsel %vm329, %v1328, 0.0
    %1332 = vadd.xlane.f32.xlu0 %v1331
    %v1333 = vpop.xlane.xlu0 %1332
    %v1334 = vsel %vm329, %v1330, 0.0
    %1335 = vadd.xlane.f32.xlu0 %v1334
    %v1336 = vpop.xlane.xlu0 %1335
    %v1337 = vrcp.pop %v1333
    %v1338 = vrcp.pop %v1336
    %v1339 = vmul.f32 %v1328, %v1337
    %v1340 = vmul.f32 %v1330, %v1338
    %v1341 = vpack.c.bf16 %v1340, %v1339
    %1342 = vrot.lane.b32.xlu0 %v1146, 88
    %v1343 = vpop.permute.xlu0 %1342
    %v1346 = vsel %vm329, %v1341, 0
    %1348 = vmatprep.subr.bf16.mxu0 0
    %1349 = vmatpush1.bf16.msra.mxu0 0
    %1350 = vmatprep.subr.bf16.mxu0 0
    %1351 = vmatpush1.bf16.msra.mxu0 0
    %1352 = vmatprep.subr.bf16.mxu0 0
    %1353 = vmatpush1.bf16.msra.mxu0 0
    %1354 = vmatprep.subr.bf16.mxu0 0
    %1355 = vmatpush1.bf16.msra.mxu0 0
    %1356 = vmatprep.subr.bf16.mxu0 0
    %1357 = vmatpush1.bf16.msra.mxu0 0
    %1358 = vmatprep.subr.bf16.mxu0 0
    %1359 = vmatpush1.bf16.msra.mxu0 0
    %1360 = vmatprep.subr.bf16.mxu0 0
    %1361 = vmatpush1.bf16.msra.mxu0 0
    %1362 = vmatprep.subr.bf16.mxu0 0
    %1363 = vmatpush1.bf16.msra.mxu0 %v1343
    %1364 = vmatprep.subr.bf16.mxu0 0
    %1365 = vmatpush2.bf16.msra.mxu0 0
    %1366 = vmatprep.subr.bf16.mxu0 0
    %1367 = vmatpush2.bf16.msra.mxu0 0
    %1368 = vmatprep.subr.bf16.mxu0 0
    %1369 = vmatpush2.bf16.msra.mxu0 0
    %1370 = vmatprep.subr.bf16.mxu0 0
    %1371 = vmatpush2.bf16.msra.mxu0 0
    %1372 = vmatprep.subr.bf16.mxu0 0
    %1373 = vmatpush2.bf16.msra.mxu0 0
    %1374 = vmatprep.subr.bf16.mxu0 0
    %1375 = vmatpush2.bf16.msra.mxu0 0
    %1376 = vmatprep.subr.bf16.mxu0 0
    %1377 = vmatpush2.bf16.msra.mxu0 0
    %1378 = vmatprep.subr.bf16.mxu0 0
    %1379 = vmatpush2.bf16.msra.mxu0 0
    %1380 = vmatprep.mubr.bf16.mxu0 0
    %1381 = vmatmul.mubr.bf16.gmra.mxu0 %v1346
    %v1382 = vpop.f32.mrf.mxu0
    %v1383 = vadd.f32 0.0, %v1382
    %v1384 = vpop.f32.mrf.mxu0
    %v1385 = vpop.f32.mrf.mxu0
    %v1386 = vadd.f32 0.0, %v1385
    %v1387 = vpop.f32.mrf.mxu0
    %1388 = vdwg.mxu0
    %v1389 = vpack.c.bf16 %v134, %v134
    %v1390 = vpack.c.bf16 %v1386, %v1383
    %v1392 = vsel %vm281, %v1390, 0
    %v1395 = vsel %vm528, %v1389, 0
    %1397 = vmatprep.subr.bf16.mxu0 0
    %1398 = vmatpush1.bf16.msra.mxu0 0
    %1399 = vmatprep.subr.bf16.mxu0 0
    %1400 = vmatpush1.bf16.msra.mxu0 0
    %1401 = vmatprep.subr.bf16.mxu0 0
    %1402 = vmatpush1.bf16.msra.mxu0 0
    %1403 = vmatprep.subr.bf16.mxu0 0
    %1404 = vmatpush1.bf16.msra.mxu0 0
    %1405 = vmatprep.subr.bf16.mxu0 0
    %1406 = vmatpush1.bf16.msra.mxu0 0
    %1407 = vmatprep.subr.bf16.mxu0 0
    %1408 = vmatpush1.bf16.msra.mxu0 0
    %1409 = vmatprep.subr.bf16.mxu0 0
    %1410 = vmatpush1.bf16.msra.mxu0 0
    %1411 = vmatprep.subr.bf16.mxu0 0
    %1412 = vmatpush1.bf16.msra.mxu0 %v1395
    %1413 = vmatprep.subr.bf16.mxu0 0
    %1414 = vmatpush2.bf16.msra.mxu0 0
    %1415 = vmatprep.subr.bf16.mxu0 0
    %1416 = vmatpush2.bf16.msra.mxu0 0
    %1417 = vmatprep.subr.bf16.mxu0 0
    %1418 = vmatpush2.bf16.msra.mxu0 0
    %1419 = vmatprep.subr.bf16.mxu0 0
    %1420 = vmatpush2.bf16.msra.mxu0 0
    %1421 = vmatprep.subr.bf16.mxu0 0
    %1422 = vmatpush2.bf16.msra.mxu0 0
    %1423 = vmatprep.subr.bf16.mxu0 0
    %1424 = vmatpush2.bf16.msra.mxu0 0
    %1425 = vmatprep.subr.bf16.mxu0 0
    %1426 = vmatpush2.bf16.msra.mxu0 0
    %1427 = vmatprep.subr.bf16.mxu0 0
    %1428 = vmatpush2.bf16.msra.mxu0 0
    %1429 = vmatprep.mubr.bf16.mxu0 0
    %1430 = vmatmul.mubr.bf16.gmra.mxu0 %v1392
    %v1431 = vpop.f32.mrf.mxu0
    %v1432 = vadd.f32 0.0, %v1431
    %v1433 = vpop.f32.mrf.mxu0
    %v1434 = vpop.f32.mrf.mxu0
    %v1435 = vadd.f32 0.0, %v1434
    %v1436 = vpop.f32.mrf.mxu0
    %1437 = vdwg.mxu0
    %v1439 = vsel %vm281, %v1266, 0
    %v1442 = vsel %vm528, %v1265, 0
    %1444 = vmatprep.subr.bf16.mxu0 0
    %1445 = vmatpush1.bf16.msra.mxu0 0
    %1446 = vmatprep.subr.bf16.mxu0 0
    %1447 = vmatpush1.bf16.msra.mxu0 0
    %1448 = vmatprep.subr.bf16.mxu0 0
    %1449 = vmatpush1.bf16.msra.mxu0 0
    %1450 = vmatprep.subr.bf16.mxu0 0
    %1451 = vmatpush1.bf16.msra.mxu0 0
    %1452 = vmatprep.subr.bf16.mxu0 0
    %1453 = vmatpush1.bf16.msra.mxu0 0
    %1454 = vmatprep.subr.bf16.mxu0 0
    %1455 = vmatpush1.bf16.msra.mxu0 0
    %1456 = vmatprep.subr.bf16.mxu0 0
    %1457 = vmatpush1.bf16.msra.mxu0 0
    %1458 = vmatprep.subr.bf16.mxu0 0
    %1459 = vmatpush1.bf16.msra.mxu0 %v1442
    %1460 = vmatprep.subr.bf16.mxu0 0
    %1461 = vmatpush2.bf16.msra.mxu0 0
    %1462 = vmatprep.subr.bf16.mxu0 0
    %1463 = vmatpush2.bf16.msra.mxu0 0
    %1464 = vmatprep.subr.bf16.mxu0 0
    %1465 = vmatpush2.bf16.msra.mxu0 0
    %1466 = vmatprep.subr.bf16.mxu0 0
    %1467 = vmatpush2.bf16.msra.mxu0 0
    %1468 = vmatprep.subr.bf16.mxu0 0
    %1469 = vmatpush2.bf16.msra.mxu0 0
    %1470 = vmatprep.subr.bf16.mxu0 0
    %1471 = vmatpush2.bf16.msra.mxu0 0
    %1472 = vmatprep.subr.bf16.mxu0 0
    %1473 = vmatpush2.bf16.msra.mxu0 0
    %1474 = vmatprep.subr.bf16.mxu0 0
    %1475 = vmatpush2.bf16.msra.mxu0 0
    %1476 = vmatprep.mubr.bf16.mxu0 0
    %1477 = vmatmul.mubr.bf16.gmra.mxu0 %v1439
    %v1478 = vpop.f32.mrf.mxu0
    %v1479 = vadd.f32 %v1432, %v1478
    %v1480 = vpop.f32.mrf.mxu0
    %v1481 = vpop.f32.mrf.mxu0
    %v1482 = vadd.f32 %v1435, %v1481
    %v1483 = vpop.f32.mrf.mxu0
    %1484 = vdwg.mxu0
    %1485 = vrot.lane.b32.xlu0 %v1145, 112
    %v1486 = vpop.permute.xlu0 %1485
    %1487 = vrot.lane.b32.xlu0 %v1146, 112
    %v1488 = vpop.permute.xlu0 %1487
    %v1490 = vsel %vm281, %v1486, 0
    %v1493 = vsel %vm281, %v1488, 0
    %1495 = vmatprep.subr.bf16.mxu0 0
    %1496 = vmatpush1.bf16.xpose.msra.mxu0 0
    %1497 = vmatprep.subr.bf16.mxu0 0
    %1498 = vmatpush1.bf16.xpose.msra.mxu0 0
    %1499 = vmatprep.subr.bf16.mxu0 0
    %1500 = vmatpush1.bf16.xpose.msra.mxu0 0
    %1501 = vmatprep.subr.bf16.mxu0 0
    %1502 = vmatpush1.bf16.xpose.msra.mxu0 0
    %1503 = vmatprep.subr.bf16.mxu0 0
    %1504 = vmatpush1.bf16.xpose.msra.mxu0 0
    %1505 = vmatprep.subr.bf16.mxu0 0
    %1506 = vmatpush1.bf16.xpose.msra.mxu0 0
    %1507 = vmatprep.subr.bf16.mxu0 0
    %1508 = vmatpush1.bf16.xpose.msra.mxu0 0
    %1509 = vmatprep.subr.bf16.mxu0 0
    %1510 = vmatpush1.bf16.xpose.msra.mxu0 %v1493
    %1511 = vmatprep.subr.bf16.mxu0 0
    %1512 = vmatpush2.bf16.xpose.msra.mxu0 0
    %1513 = vmatprep.subr.bf16.mxu0 0
    %1514 = vmatpush2.bf16.xpose.msra.mxu0 0
    %1515 = vmatprep.subr.bf16.mxu0 0
    %1516 = vmatpush2.bf16.xpose.msra.mxu0 0
    %1517 = vmatprep.subr.bf16.mxu0 0
    %1518 = vmatpush2.bf16.xpose.msra.mxu0 0
    %1519 = vmatprep.subr.bf16.mxu0 0
    %1520 = vmatpush2.bf16.xpose.msra.mxu0 0
    %1521 = vmatprep.subr.bf16.mxu0 0
    %1522 = vmatpush2.bf16.xpose.msra.mxu0 0
    %1523 = vmatprep.subr.bf16.mxu0 0
    %1524 = vmatpush2.bf16.xpose.msra.mxu0 0
    %1525 = vmatprep.subr.bf16.mxu0 0
    %1526 = vmatpush2.bf16.xpose.msra.mxu0 0
    %1527 = vmatprep.mubr.bf16.mxu0 0
    %1528 = vmatmul.mubr.bf16.gmra.mxu0 %v1490
    %v1529 = vpop.f32.mrf.mxu0
    %v1530 = vadd.f32 %v114, %v1529
    %v1531 = vpop.f32.mrf.mxu0
    %v1532 = vpop.f32.mrf.mxu0
    %v1533 = vadd.f32 %v115, %v1532
    %v1534 = vpop.f32.mrf.mxu0
    %1535 = vdwg.mxu0
    %v1536 = vsel %vm329, %v1530, -inf
    %1537 = vmax.xlane.f32.xlu0 %v1536
    %v1538 = vpop.xlane.xlu0 %1537
    %v1539 = vsel %vm329, %v1533, -inf
    %1540 = vmax.xlane.f32.xlu0 %v1539
    %v1541 = vpop.xlane.xlu0 %1540
    %v1542 = vsub.f32 %v1530, %v1538
    %v1543 = vsub.f32 %v1533, %v1541
    %v1544 = vmul.f32 %v1542, 1.442695
    %v1545 = vpow.pop %v1544
    %v1546 = vmul.f32 %v1543, 1.442695
    %v1547 = vpow.pop %v1546
    %v1548 = vsel %vm329, %v1545, 0.0
    %1549 = vadd.xlane.f32.xlu0 %v1548
    %v1550 = vpop.xlane.xlu0 %1549
    %v1551 = vsel %vm329, %v1547, 0.0
    %1552 = vadd.xlane.f32.xlu0 %v1551
    %v1553 = vpop.xlane.xlu0 %1552
    %v1554 = vrcp.pop %v1550
    %v1555 = vrcp.pop %v1553
    %v1556 = vmul.f32 %v1545, %v1554
    %v1557 = vmul.f32 %v1547, %v1555
    %v1558 = vpack.c.bf16 %v1557, %v1556
    %1559 = vrot.lane.b32.xlu0 %v1146, 80
    %v1560 = vpop.permute.xlu0 %1559
    %v1563 = vsel %vm329, %v1558, 0
    %1565 = vmatprep.subr.bf16.mxu0 0
    %1566 = vmatpush1.bf16.msra.mxu0 0
    %1567 = vmatprep.subr.bf16.mxu0 0
    %1568 = vmatpush1.bf16.msra.mxu0 0
    %1569 = vmatprep.subr.bf16.mxu0 0
    %1570 = vmatpush1.bf16.msra.mxu0 0
    %1571 = vmatprep.subr.bf16.mxu0 0
    %1572 = vmatpush1.bf16.msra.mxu0 0
    %1573 = vmatprep.subr.bf16.mxu0 0
    %1574 = vmatpush1.bf16.msra.mxu0 0
    %1575 = vmatprep.subr.bf16.mxu0 0
    %1576 = vmatpush1.bf16.msra.mxu0 0
    %1577 = vmatprep.subr.bf16.mxu0 0
    %1578 = vmatpush1.bf16.msra.mxu0 0
    %1579 = vmatprep.subr.bf16.mxu0 0
    %1580 = vmatpush1.bf16.msra.mxu0 %v1560
    %1581 = vmatprep.subr.bf16.mxu0 0
    %1582 = vmatpush2.bf16.msra.mxu0 0
    %1583 = vmatprep.subr.bf16.mxu0 0
    %1584 = vmatpush2.bf16.msra.mxu0 0
    %1585 = vmatprep.subr.bf16.mxu0 0
    %1586 = vmatpush2.bf16.msra.mxu0 0
    %1587 = vmatprep.subr.bf16.mxu0 0
    %1588 = vmatpush2.bf16.msra.mxu0 0
    %1589 = vmatprep.subr.bf16.mxu0 0
    %1590 = vmatpush2.bf16.msra.mxu0 0
    %1591 = vmatprep.subr.bf16.mxu0 0
    %1592 = vmatpush2.bf16.msra.mxu0 0
    %1593 = vmatprep.subr.bf16.mxu0 0
    %1594 = vmatpush2.bf16.msra.mxu0 0
    %1595 = vmatprep.subr.bf16.mxu0 0
    %1596 = vmatpush2.bf16.msra.mxu0 0
    %1597 = vmatprep.mubr.bf16.mxu0 0
    %1598 = vmatmul.mubr.bf16.gmra.mxu0 %v1563
    %v1599 = vpop.f32.mrf.mxu0
    %v1600 = vadd.f32 0.0, %v1599
    %v1601 = vpop.f32.mrf.mxu0
    %v1602 = vpop.f32.mrf.mxu0
    %v1603 = vadd.f32 0.0, %v1602
    %v1604 = vpop.f32.mrf.mxu0
    %1605 = vdwg.mxu0
    %v1606 = vpack.c.bf16 %v135, %v135
    %v1607 = vpack.c.bf16 %v1603, %v1600
    %v1609 = vsel %vm281, %v1607, 0
    %v1612 = vsel %vm528, %v1606, 0
    %1614 = vmatprep.subr.bf16.mxu0 0
    %1615 = vmatpush1.bf16.msra.mxu0 0
    %1616 = vmatprep.subr.bf16.mxu0 0
    %1617 = vmatpush1.bf16.msra.mxu0 0
    %1618 = vmatprep.subr.bf16.mxu0 0
    %1619 = vmatpush1.bf16.msra.mxu0 0
    %1620 = vmatprep.subr.bf16.mxu0 0
    %1621 = vmatpush1.bf16.msra.mxu0 0
    %1622 = vmatprep.subr.bf16.mxu0 0
    %1623 = vmatpush1.bf16.msra.mxu0 0
    %1624 = vmatprep.subr.bf16.mxu0 0
    %1625 = vmatpush1.bf16.msra.mxu0 0
    %1626 = vmatprep.subr.bf16.mxu0 0
    %1627 = vmatpush1.bf16.msra.mxu0 0
    %1628 = vmatprep.subr.bf16.mxu0 0
    %1629 = vmatpush1.bf16.msra.mxu0 %v1612
    %1630 = vmatprep.subr.bf16.mxu0 0
    %1631 = vmatpush2.bf16.msra.mxu0 0
    %1632 = vmatprep.subr.bf16.mxu0 0
    %1633 = vmatpush2.bf16.msra.mxu0 0
    %1634 = vmatprep.subr.bf16.mxu0 0
    %1635 = vmatpush2.bf16.msra.mxu0 0
    %1636 = vmatprep.subr.bf16.mxu0 0
    %1637 = vmatpush2.bf16.msra.mxu0 0
    %1638 = vmatprep.subr.bf16.mxu0 0
    %1639 = vmatpush2.bf16.msra.mxu0 0
    %1640 = vmatprep.subr.bf16.mxu0 0
    %1641 = vmatpush2.bf16.msra.mxu0 0
    %1642 = vmatprep.subr.bf16.mxu0 0
    %1643 = vmatpush2.bf16.msra.mxu0 0
    %1644 = vmatprep.subr.bf16.mxu0 0
    %1645 = vmatpush2.bf16.msra.mxu0 0
    %1646 = vmatprep.mubr.bf16.mxu0 0
    %1647 = vmatmul.mubr.bf16.gmra.mxu0 %v1609
    %v1648 = vpop.f32.mrf.mxu0
    %v1649 = vadd.f32 0.0, %v1648
    %v1650 = vpop.f32.mrf.mxu0
    %v1651 = vpop.f32.mrf.mxu0
    %v1652 = vadd.f32 0.0, %v1651
    %v1653 = vpop.f32.mrf.mxu0
    %1654 = vdwg.mxu0
    %v1655 = vadd.f32 %v1479, %v1649
    %v1656 = vadd.f32 %v1482, %v1652
    %1657 = vrot.lane.b32.xlu0 %v1145, 104
    %v1658 = vpop.permute.xlu0 %1657
    %1659 = vrot.lane.b32.xlu0 %v1146, 104
    %v1660 = vpop.permute.xlu0 %1659
    %v1662 = vsel %vm281, %v1658, 0
    %v1665 = vsel %vm281, %v1660, 0
    %1667 = vmatprep.subr.bf16.mxu0 0
    %1668 = vmatpush1.bf16.xpose.msra.mxu0 0
    %1669 = vmatprep.subr.bf16.mxu0 0
    %1670 = vmatpush1.bf16.xpose.msra.mxu0 0
    %1671 = vmatprep.subr.bf16.mxu0 0
    %1672 = vmatpush1.bf16.xpose.msra.mxu0 0
    %1673 = vmatprep.subr.bf16.mxu0 0
    %1674 = vmatpush1.bf16.xpose.msra.mxu0 0
    %1675 = vmatprep.subr.bf16.mxu0 0
    %1676 = vmatpush1.bf16.xpose.msra.mxu0 0
    %1677 = vmatprep.subr.bf16.mxu0 0
    %1678 = vmatpush1.bf16.xpose.msra.mxu0 0
    %1679 = vmatprep.subr.bf16.mxu0 0
    %1680 = vmatpush1.bf16.xpose.msra.mxu0 0
    %1681 = vmatprep.subr.bf16.mxu0 0
    %1682 = vmatpush1.bf16.xpose.msra.mxu0 %v1665
    %1683 = vmatprep.subr.bf16.mxu0 0
    %1684 = vmatpush2.bf16.xpose.msra.mxu0 0
    %1685 = vmatprep.subr.bf16.mxu0 0
    %1686 = vmatpush2.bf16.xpose.msra.mxu0 0
    %1687 = vmatprep.subr.bf16.mxu0 0
    %1688 = vmatpush2.bf16.xpose.msra.mxu0 0
    %1689 = vmatprep.subr.bf16.mxu0 0
    %1690 = vmatpush2.bf16.xpose.msra.mxu0 0
    %1691 = vmatprep.subr.bf16.mxu0 0
    %1692 = vmatpush2.bf16.xpose.msra.mxu0 0
    %1693 = vmatprep.subr.bf16.mxu0 0
    %1694 = vmatpush2.bf16.xpose.msra.mxu0 0
    %1695 = vmatprep.subr.bf16.mxu0 0
    %1696 = vmatpush2.bf16.xpose.msra.mxu0 0
    %1697 = vmatprep.subr.bf16.mxu0 0
    %1698 = vmatpush2.bf16.xpose.msra.mxu0 0
    %1699 = vmatprep.mubr.bf16.mxu0 0
    %1700 = vmatmul.mubr.bf16.gmra.mxu0 %v1662
    %v1701 = vpop.f32.mrf.mxu0
    %v1702 = vadd.f32 %v114, %v1701
    %v1703 = vpop.f32.mrf.mxu0
    %v1704 = vpop.f32.mrf.mxu0
    %v1705 = vadd.f32 %v115, %v1704
    %v1706 = vpop.f32.mrf.mxu0
    %1707 = vdwg.mxu0
    %v1708 = vsel %vm329, %v1702, -inf
    %1709 = vmax.xlane.f32.xlu0 %v1708
    %v1710 = vpop.xlane.xlu0 %1709
    %v1711 = vsel %vm329, %v1705, -inf
    %1712 = vmax.xlane.f32.xlu0 %v1711
    %v1713 = vpop.xlane.xlu0 %1712
    %v1714 = vsub.f32 %v1702, %v1710
    %v1715 = vsub.f32 %v1705, %v1713
    %v1716 = vmul.f32 %v1714, 1.442695
    %v1717 = vpow.pop %v1716
    %v1718 = vmul.f32 %v1715, 1.442695
    %v1719 = vpow.pop %v1718
    %v1720 = vsel %vm329, %v1717, 0.0
    %1721 = vadd.xlane.f32.xlu0 %v1720
    %v1722 = vpop.xlane.xlu0 %1721
    %v1723 = vsel %vm329, %v1719, 0.0
    %1724 = vadd.xlane.f32.xlu0 %v1723
    %v1725 = vpop.xlane.xlu0 %1724
    %v1726 = vrcp.pop %v1722
    %v1727 = vrcp.pop %v1725
    %v1728 = vmul.f32 %v1717, %v1726
    %v1729 = vmul.f32 %v1719, %v1727
    %v1730 = vpack.c.bf16 %v1729, %v1728
    %1731 = vrot.lane.b32.xlu0 %v1146, 72
    %v1732 = vpop.permute.xlu0 %1731
    %v1735 = vsel %vm329, %v1730, 0
    %1737 = vmatprep.subr.bf16.mxu0 0
    %1738 = vmatpush1.bf16.msra.mxu0 0
    %1739 = vmatprep.subr.bf16.mxu0 0
    %1740 = vmatpush1.bf16.msra.mxu0 0
    %1741 = vmatprep.subr.bf16.mxu0 0
    %1742 = vmatpush1.bf16.msra.mxu0 0
    %1743 = vmatprep.subr.bf16.mxu0 0
    %1744 = vmatpush1.bf16.msra.mxu0 0
    %1745 = vmatprep.subr.bf16.mxu0 0
    %1746 = vmatpush1.bf16.msra.mxu0 0
    %1747 = vmatprep.subr.bf16.mxu0 0
    %1748 = vmatpush1.bf16.msra.mxu0 0
    %1749 = vmatprep.subr.bf16.mxu0 0
    %1750 = vmatpush1.bf16.msra.mxu0 0
    %1751 = vmatprep.subr.bf16.mxu0 0
    %1752 = vmatpush1.bf16.msra.mxu0 %v1732
    %1753 = vmatprep.subr.bf16.mxu0 0
    %1754 = vmatpush2.bf16.msra.mxu0 0
    %1755 = vmatprep.subr.bf16.mxu0 0
    %1756 = vmatpush2.bf16.msra.mxu0 0
    %1757 = vmatprep.subr.bf16.mxu0 0
    %1758 = vmatpush2.bf16.msra.mxu0 0
    %1759 = vmatprep.subr.bf16.mxu0 0
    %1760 = vmatpush2.bf16.msra.mxu0 0
    %1761 = vmatprep.subr.bf16.mxu0 0
    %1762 = vmatpush2.bf16.msra.mxu0 0
    %1763 = vmatprep.subr.bf16.mxu0 0
    %1764 = vmatpush2.bf16.msra.mxu0 0
    %1765 = vmatprep.subr.bf16.mxu0 0
    %1766 = vmatpush2.bf16.msra.mxu0 0
    %1767 = vmatprep.subr.bf16.mxu0 0
    %1768 = vmatpush2.bf16.msra.mxu0 0
    %1769 = vmatprep.mubr.bf16.mxu0 0
    %1770 = vmatmul.mubr.bf16.gmra.mxu0 %v1735
    %v1771 = vpop.f32.mrf.mxu0
    %v1772 = vadd.f32 0.0, %v1771
    %v1773 = vpop.f32.mrf.mxu0
    %v1774 = vpop.f32.mrf.mxu0
    %v1775 = vadd.f32 0.0, %v1774
    %v1776 = vpop.f32.mrf.mxu0
    %1777 = vdwg.mxu0
    %v1778 = vpack.c.bf16 %v136, %v136
    %v1779 = vpack.c.bf16 %v1775, %v1772
    %v1781 = vsel %vm281, %v1779, 0
    %v1784 = vsel %vm528, %v1778, 0
    %1786 = vmatprep.subr.bf16.mxu0 0
    %1787 = vmatpush1.bf16.msra.mxu0 0
    %1788 = vmatprep.subr.bf16.mxu0 0
    %1789 = vmatpush1.bf16.msra.mxu0 0
    %1790 = vmatprep.subr.bf16.mxu0 0
    %1791 = vmatpush1.bf16.msra.mxu0 0
    %1792 = vmatprep.subr.bf16.mxu0 0
    %1793 = vmatpush1.bf16.msra.mxu0 0
    %1794 = vmatprep.subr.bf16.mxu0 0
    %1795 = vmatpush1.bf16.msra.mxu0 0
    %1796 = vmatprep.subr.bf16.mxu0 0
    %1797 = vmatpush1.bf16.msra.mxu0 0
    %1798 = vmatprep.subr.bf16.mxu0 0
    %1799 = vmatpush1.bf16.msra.mxu0 0
    %1800 = vmatprep.subr.bf16.mxu0 0
    %1801 = vmatpush1.bf16.msra.mxu0 %v1784
    %1802 = vmatprep.subr.bf16.mxu0 0
    %1803 = vmatpush2.bf16.msra.mxu0 0
    %1804 = vmatprep.subr.bf16.mxu0 0
    %1805 = vmatpush2.bf16.msra.mxu0 0
    %1806 = vmatprep.subr.bf16.mxu0 0
    %1807 = vmatpush2.bf16.msra.mxu0 0
    %1808 = vmatprep.subr.bf16.mxu0 0
    %1809 = vmatpush2.bf16.msra.mxu0 0
    %1810 = vmatprep.subr.bf16.mxu0 0
    %1811 = vmatpush2.bf16.msra.mxu0 0
    %1812 = vmatprep.subr.bf16.mxu0 0
    %1813 = vmatpush2.bf16.msra.mxu0 0
    %1814 = vmatprep.subr.bf16.mxu0 0
    %1815 = vmatpush2.bf16.msra.mxu0 0
    %1816 = vmatprep.subr.bf16.mxu0 0
    %1817 = vmatpush2.bf16.msra.mxu0 0
    %1818 = vmatprep.mubr.bf16.mxu0 0
    %1819 = vmatmul.mubr.bf16.gmra.mxu0 %v1781
    %v1820 = vpop.f32.mrf.mxu0
    %v1821 = vadd.f32 0.0, %v1820
    %v1822 = vpop.f32.mrf.mxu0
    %v1823 = vpop.f32.mrf.mxu0
    %v1824 = vadd.f32 0.0, %v1823
    %v1825 = vpop.f32.mrf.mxu0
    %1826 = vdwg.mxu0
    %v1827 = vadd.f32 %v1655, %v1821
    %v1828 = vadd.f32 %v1656, %v1824
    %v1829 = vadd.f32 %v970, %v1827
    %v1830 = vadd.f32 %v971, %v1828
    %v1831 = vlaneseq
    %v1832 = vshrl.u32 %v1831, 7
    %v1833 = vsub.s32 0, %v1832
    %v1834 = vrot.slane %v126, %v1833
    %v1835 = vadd.f32 %v1829, %v1834
    %v1836 = vadd.f32 %v1830, %v1834
    %v1837 = vsel %vm161, %v1835, 0.0
    %1838 = vadd.xlane.f32.xlu0 %v1837
    %v1839 = vpop.xlane.xlu0 %1838
    %v1840 = vsel %vm161, %v1836, 0.0
    %1841 = vadd.xlane.f32.xlu0 %v1840
    %v1842 = vpop.xlane.xlu0 %1841
    %v1843 = vmul.f32 %v1839, %v168
    %v1844 = vmul.f32 %v1842, %v168
    %v1845 = vsub.f32 %v1835, %v1843
    %v1846 = vsub.f32 %v1836, %v1844
    %v1847 = vmul.f32 %v1845, %v1845
    %v1848 = vmul.f32 %v1846, %v1846
    %v1849 = vsel %vm161, %v1847, 0.0
    %1850 = vadd.xlane.f32.xlu0 %v1849
    %v1851 = vpop.xlane.xlu0 %1850
    %v1852 = vsel %vm161, %v1848, 0.0
    %1853 = vadd.xlane.f32.xlu0 %v1852
    %v1854 = vpop.xlane.xlu0 %1853
    %v1855 = vmul.f32 %v1851, %v181
    %v1856 = vmul.f32 %v1854, %v181
    %v1857 = vrsqrt.pop %v1855
    %v1858 = vmul.f32 %v1855, %v1857
    %vm1859 = vcmp.eq.f32.partialorder %v1855, inf
    %v1860 = vsel %vm1859, %v1855, %v1858
    %vm1861 = vcmp.eq.f32.partialorder %v1855, 0.0
    %v1862 = vand.u32 %v1855, 2147483648
    %v1863 = vsel %vm1861, %v1862, %v1860
    %v1864 = vrsqrt.pop %v1856
    %v1865 = vmul.f32 %v1856, %v1864
    %vm1866 = vcmp.eq.f32.partialorder %v1856, inf
    %v1867 = vsel %vm1866, %v1856, %v1865
    %vm1868 = vcmp.eq.f32.partialorder %v1856, 0.0
    %v1869 = vand.u32 %v1856, 2147483648
    %v1870 = vsel %vm1868, %v1869, %v1867
    %v1871 = vadd.f32 %v1863, 1e-06
    %v1872 = vadd.f32 %v1870, 1e-06
    %v1873 = vrcp.pop %v1871
    %v1874 = vrcp.pop %v1872
    %v1875 = vlaneseq
    %v1876 = vshrl.u32 %v1875, 7
    %v1877 = vsub.s32 0, %v1876
    %v1878 = vrot.slane %v120, %v1877
    %v1879 = vmul.f32 %v1878, %v1845
    %v1880 = vmul.f32 %v1878, %v1846
    %v1881 = vmul.f32 %v1879, %v1873
    %v1882 = vmul.f32 %v1880, %v1874
    %v1883 = vlaneseq
    %v1884 = vshrl.u32 %v1883, 7
    %v1885 = vsub.s32 0, %v1884
    %v1886 = vrot.slane %v121, %v1885
    %v1887 = vadd.f32 %v1881, %v1886
    %v1888 = vadd.f32 %v1882, %v1886
    %v1889 = vpack.c.bf16 %v1888, %v1887
    %v1890 = vlaneseq
    %v1891 = vshrl.u32 %v1890, 7
    %v1892 = vsub.s32 0, %v1891
    %v1893 = vrot.slane %v127, %v1892
    %v1898 = vunpack.c.l.b16 %v149
    %v1899 = vunpack.c.l.b16 %v150
    %v1900 = vunpack.c.l.b16 %v151
    %v1901 = vunpack.c.l.b16 %v152
    %v1902 = vpack.c.b16 %v1899, %v1898
    %v1903 = vpack.c.b16 %v1901, %v1900
    %v1907 = vsel %vm161, %v1889, 0
    %1909 = vmatprep.subr.bf16.mxu0 0
    %1910 = vmatpush1.bf16.msra.mxu0 0
    %1911 = vmatprep.subr.bf16.mxu0 0
    %1912 = vmatpush1.bf16.msra.mxu0 0
    %1913 = vmatprep.subr.bf16.mxu0 0
    %1914 = vmatpush1.bf16.msra.mxu0 0
    %1915 = vmatprep.subr.bf16.mxu0 0
    %1916 = vmatpush1.bf16.msra.mxu0 0
    %1917 = vmatprep.subr.bf16.mxu0 0
    %1918 = vmatpush1.bf16.msra.mxu0 0
    %1919 = vmatprep.subr.bf16.mxu0 0
    %1920 = vmatpush1.bf16.msra.mxu0 0
    %1921 = vmatprep.subr.bf16.mxu0 0
    %1922 = vmatpush1.bf16.msra.mxu0 %v1903
    %1923 = vmatprep.subr.bf16.mxu0 0
    %1924 = vmatpush1.bf16.msra.mxu0 %v1902
    %1925 = vmatprep.subr.bf16.mxu0 0
    %1926 = vmatpush2.bf16.msra.mxu0 0
    %1927 = vmatprep.subr.bf16.mxu0 0
    %1928 = vmatpush2.bf16.msra.mxu0 0
    %1929 = vmatprep.subr.bf16.mxu0 0
    %1930 = vmatpush2.bf16.msra.mxu0 0
    %1931 = vmatprep.subr.bf16.mxu0 0
    %1932 = vmatpush2.bf16.msra.mxu0 0
    %1933 = vmatprep.subr.bf16.mxu0 0
    %1934 = vmatpush2.bf16.msra.mxu0 0
    %1935 = vmatprep.subr.bf16.mxu0 0
    %1936 = vmatpush2.bf16.msra.mxu0 0
    %1937 = vmatprep.subr.bf16.mxu0 0
    %1938 = vmatpush2.bf16.msra.mxu0 0
    %1939 = vmatprep.subr.bf16.mxu0 0
    %1940 = vmatpush2.bf16.msra.mxu0 0
    %1941 = vmatprep.mubr.bf16.mxu0 0
    %1942 = vmatmul.mubr.bf16.gmra.mxu0 %v1907
    %v1943 = vpop.f32.mrf.mxu0
    %v1944 = vadd.f32 %v1893, %v1943
    %v1945 = vpop.f32.mrf.mxu0
    %v1946 = vpop.f32.mrf.mxu0
    %v1947 = vadd.f32 %v1893, %v1946
    %v1948 = vpop.f32.mrf.mxu0
    %1949 = vdwg.mxu0
    %v1950 = vmax.f32 %v1944, 0.0
    %v1951 = vmax.f32 %v1947, 0.0
    %v1952 = vpack.c.bf16 %v1951, %v1950
    %v1961 = vunpack.c.l.b16 %v153
    %v1962 = vunpack.c.l.b16 %v154
    %v1963 = vunpack.c.l.b16 %v155
    %v1964 = vunpack.c.l.b16 %v156
    %v1965 = vunpack.c.l.b16 %v157
    %v1966 = vunpack.c.l.b16 %v158
    %v1967 = vunpack.c.l.b16 %v159
    %v1968 = vunpack.c.l.b16 %v160
    %v1969 = vpack.c.b16 %v1962, %v1961
    %v1970 = vpack.c.b16 %v1964, %v1963
    %v1971 = vpack.c.b16 %v1966, %v1965
    %v1972 = vpack.c.b16 %v1968, %v1967
    %vm1977 = vcmask 523264
    %v1979 = vsel %vm1977, %v1952, 0
    %1981 = vmatprep.subr.bf16.mxu0 0
    %1982 = vmatpush1.bf16.msra.mxu0 0
    %1983 = vmatprep.subr.bf16.mxu0 0
    %1984 = vmatpush1.bf16.msra.mxu0 0
    %1985 = vmatprep.subr.bf16.mxu0 0
    %1986 = vmatpush1.bf16.msra.mxu0 0
    %1987 = vmatprep.subr.bf16.mxu0 0
    %1988 = vmatpush1.bf16.msra.mxu0 0
    %1989 = vmatprep.subr.bf16.mxu0 0
    %1990 = vmatpush1.bf16.msra.mxu0 %v1972
    %1991 = vmatprep.subr.bf16.mxu0 0
    %1992 = vmatpush1.bf16.msra.mxu0 %v1971
    %1993 = vmatprep.subr.bf16.mxu0 0
    %1994 = vmatpush1.bf16.msra.mxu0 %v1970
    %1995 = vmatprep.subr.bf16.mxu0 0
    %1996 = vmatpush1.bf16.msra.mxu0 %v1969
    %1997 = vmatprep.subr.bf16.mxu0 0
    %1998 = vmatpush2.bf16.msra.mxu0 0
    %1999 = vmatprep.subr.bf16.mxu0 0
    %2000 = vmatpush2.bf16.msra.mxu0 0
    %2001 = vmatprep.subr.bf16.mxu0 0
    %2002 = vmatpush2.bf16.msra.mxu0 0
    %2003 = vmatprep.subr.bf16.mxu0 0
    %2004 = vmatpush2.bf16.msra.mxu0 0
    %2005 = vmatprep.subr.bf16.mxu0 0
    %2006 = vmatpush2.bf16.msra.mxu0 0
    %2007 = vmatprep.subr.bf16.mxu0 0
    %2008 = vmatpush2.bf16.msra.mxu0 0
    %2009 = vmatprep.subr.bf16.mxu0 0
    %2010 = vmatpush2.bf16.msra.mxu0 0
    %2011 = vmatprep.subr.bf16.mxu0 0
    %2012 = vmatpush2.bf16.msra.mxu0 0
    %2013 = vmatprep.mubr.bf16.mxu0 0
    %2014 = vmatmul.mubr.bf16.gmra.mxu0 %v1979
    %v2015 = vpop.f32.mrf.mxu0
    %v2016 = vadd.f32 0.0, %v2015
    %v2017 = vpop.f32.mrf.mxu0
    %v2018 = vpop.f32.mrf.mxu0
    %v2019 = vadd.f32 0.0, %v2018
    %v2020 = vpop.f32.mrf.mxu0
    %2021 = vdwg.mxu0
    %v2022 = vadd.f32 %v1835, %v2016
    %v2023 = vadd.f32 %v1836, %v2019
    %v2024 = vlaneseq
    %v2025 = vshrl.u32 %v2024, 7
    %v2026 = vsub.s32 0, %v2025
    %v2027 = vrot.slane %v128, %v2026
    %v2028 = vadd.f32 %v2022, %v2027
    %v2029 = vadd.f32 %v2023, %v2027
    %2030 = vst.msk [vmem:[#allocation13] sm:$0xff] %vm161, %v2028
    %2031 = vst.msk [vmem:[#allocation13 + $0x8] sm:$0xff] %vm161, %v2029
    // Predicated region
    $region50: #{tpu_custom_call.1} parent=1 // pred_check
      _
    $region51: #{tpu_custom_call.1} parent=1 // pred_check_branch
      %2033 = sbr.rel (0) target = $region53
    $region52: #{tpu_custom_call.1} parent=1 // pred_region
      %s2035 = ssub.s32 256, 256
      %2036 = vsyncadd [#allocation4], %s2035
      %s2037 = sshll.u32 [#allocation13], 4
      %s2038 = int_to_ptr.vmem [resolvable:$true] %s2037
      %2043 = dma.vmem_to_hbm [thread:$0]  %s2038, 256, %s6, [#allocation4], 128, 128, 8
    $region53: #{tpu_custom_call.1} parent=1 // pred_fallthru
      _
    // Predicated region
    $region54: #{tpu_custom_call.1} parent=1 // pred_check
      _
    $region55: #{tpu_custom_call.1} parent=1 // pred_check_branch
      %2045 = sbr.rel (0) target = $region57
    $region56: #{tpu_custom_call.1} parent=1 // pred_region
      %2046 = dma.done [#allocation4], 256
    $region57: #{tpu_custom_call.1} parent=1 // pred_fallthru
      _
    %2047 = vsyncpa [#allocation3], 1
    %2048 = vsyncpa [#allocation6], 1
    %2049 = vsyncpa [#allocation9], 1
    %2050 = vsyncpa [#allocation12], 1
    %2051 = vsyncpa [#allocation4], 1

</llo_original>
